<compile_context>
chip_gen: v7x
topology: tpu7x:2x2x1
jax: 0.10.0
libtpu: 0.0.40
codegen_flags: <defaults>
</compile_context>

<pallas_src>
import functools

import jax
import jax.numpy as jnp
from jax.experimental import pallas as pl
from jax.experimental.pallas import tpu as pltpu

BN_EPS = 1e-5


# ----------------------------------------------------------------------------
# Pallas kernels
# ----------------------------------------------------------------------------
def _convmm_kernel(w_ref, a_ref, s_ref, t_ref, o_ref, *, activation):
    """out = act((W^T @ patches^T) * scale + shift), lane-dense over M."""
    y = jnp.dot(w_ref[...], a_ref[...], preferred_element_type=jnp.float32)
    y = y * s_ref[...] + t_ref[...]
    if activation == "relu":
        y = jnp.maximum(y, 0.0)
    elif activation == "tanh":
        y = jnp.tanh(y)
    o_ref[...] = y.astype(o_ref.dtype)


def _resblock_kernel(a_ref, w1_ref, s1_ref, t1_ref, w2_ref, b2_ref,
                     x_ref, ps_ref, pt_ref, o_ref):
    """Fused ResBlock (+ optional following BatchNorm folded into ps/pt).

    a_ref holds 3x3/pad-1 patches of the *pre-activation* block input x; the
    leading ReLU is applied here (ReLU commutes with the zero padding used to
    build the patches).
    """
    a = jnp.maximum(a_ref[...], 0).astype(jnp.bfloat16)          # ReLU(x) patches
    h = jnp.dot(w1_ref[...], a, preferred_element_type=jnp.float32)
    h = jnp.maximum(h * s1_ref[...] + t1_ref[...], 0.0)          # 3x3 conv + BN + ReLU
    y = jnp.dot(w2_ref[...], h.astype(jnp.bfloat16),
                preferred_element_type=jnp.float32) + b2_ref[...]  # 1x1 conv + bias
    y = (x_ref[...] + y) * ps_ref[...] + pt_ref[...]             # residual + post-BN
    o_ref[...] = y.astype(o_ref.dtype)


# ----------------------------------------------------------------------------
# Tiling / wrapper helpers
# ----------------------------------------------------------------------------
def _choose_tm(M):
    # Tile only the (large, lane-dense) M axis.  256-wide tiles when M splits
    # evenly (>= 2 tiles -> both v7x TensorCores get work); otherwise one
    # full-extent block.  Everything here is far below VMEM limits.
    if M > 256 and M % 256 == 0:
        return 256
    if M > 512 and M % 128 == 0:
        return 128
    return M


def _im2col_t(x, KH, KW, stride, padding):
    """x: (C, B, H, W) -> patches^T (C*KH*KW, B*OH*OW), K ordered (C, kh, kw)."""
    C, B, H, W = x.shape
    xp = jnp.pad(x, ((0, 0), (0, 0), (padding, padding), (padding, padding)))
    OH = (H + 2 * padding - KH) // stride + 1
    OW = (W + 2 * padding - KW) // stride + 1
    taps = []
    for kh in range(KH):
        for kw in range(KW):
            taps.append(xp[:, :, kh:kh + OH * stride:stride,
                              kw:kw + OW * stride:stride])
    a = jnp.stack(taps, axis=1)                     # (C, KH*KW, B, OH, OW)
    return a.reshape(C * KH * KW, B * OH * OW), OH, OW


def _matmul_fused_t(w_t, a_t, s, t, activation):
    """out[n, m] = act(sum_k w_t[n, k] * a_t[k, m] * s[n] + t[n])."""
    N, K = w_t.shape
    _, M = a_t.shape
    TM = _choose_tm(M)
    return pl.pallas_call(
        functools.partial(_convmm_kernel, activation=activation),
        out_shape=jax.ShapeDtypeStruct((N, M), jnp.float32),
        grid_spec=pltpu.PrefetchScalarGridSpec(
            num_scalar_prefetch=0,
            grid=(M // TM,),
            in_specs=[
                pl.BlockSpec((N, K), lambda i: (0, 0)),
                pl.BlockSpec((K, TM), lambda i: (0, i)),
                pl.BlockSpec((N, 1), lambda i: (0, 0)),
                pl.BlockSpec((N, 1), lambda i: (0, 0)),
            ],
            out_specs=pl.BlockSpec((N, TM), lambda i: (0, i)),
        ),
        compiler_params=pltpu.CompilerParams(
            dimension_semantics=("parallel",)),
    )(w_t, a_t, s, t)


def conv_layer(x, lp, *, ksize, stride, pad, act):
    """x: (Cin, B, H, W) f32 -> (Cout, B, OH, OW) f32 (Conv2d + BN + act)."""
    B = x.shape[1]
    a_t, OH, OW = _im2col_t(x.astype(jnp.bfloat16), ksize, ksize, stride, pad)
    out = _matmul_fused_t(lp["w_t"], a_t, lp["s"], lp["t"], act)
    Cout = lp["w_t"].shape[0]
    return out.reshape(Cout, B, OH, OW)


def deconv_layer(x, lp, *, act):
    """ConvTranspose2d(k=4,s=2,p=1)+BN+act as subpixel 3x3 conv + x2 shuffle."""
    Cin, B, H, W = x.shape
    Cout = lp["cout"]
    a_t, _, _ = _im2col_t(x.astype(jnp.bfloat16), 3, 3, 1, 1)
    out = _matmul_fused_t(lp["w_t"], a_t, lp["s"], lp["t"], act)  # (4*Cout, B*H*W)
    y = out.reshape(2, 2, Cout, B, H, W)                          # (py, px, c, b, h, w)
    y = y.transpose(2, 3, 4, 0, 5, 1).reshape(Cout, B, 2 * H, 2 * W)
    return y


def resblock_layer(x, lp):
    """x + ResBlock(x), with any following BatchNorm folded into the epilogue."""
    C, B, H, W = x.shape
    M = B * H * W
    a_t, _, _ = _im2col_t(x.astype(jnp.bfloat16), 3, 3, 1, 1)
    x_flat = x.reshape(C, M).astype(jnp.float32)
    K1 = a_t.shape[0]
    TM = _choose_tm(M)
    out = pl.pallas_call(
        _resblock_kernel,
        out_shape=jax.ShapeDtypeStruct((C, M), jnp.float32),
        grid_spec=pltpu.PrefetchScalarGridSpec(
            num_scalar_prefetch=0,
            grid=(M // TM,),
            in_specs=[
                pl.BlockSpec((K1, TM), lambda i: (0, i)),   # patches^T
                pl.BlockSpec((C, K1), lambda i: (0, 0)),    # W1^T
                pl.BlockSpec((C, 1), lambda i: (0, 0)),     # BN scale (w/ b1)
                pl.BlockSpec((C, 1), lambda i: (0, 0)),     # BN shift (w/ b1)
                pl.BlockSpec((C, C), lambda i: (0, 0)),     # W2^T (1x1 conv)
                pl.BlockSpec((C, 1), lambda i: (0, 0)),     # b2
                pl.BlockSpec((C, TM), lambda i: (0, i)),    # residual x
                pl.BlockSpec((C, 1), lambda i: (0, 0)),     # post-BN scale
                pl.BlockSpec((C, 1), lambda i: (0, 0)),     # post-BN shift
            ],
            out_specs=pl.BlockSpec((C, TM), lambda i: (0, i)),
        ),
        compiler_params=pltpu.CompilerParams(
            dimension_semantics=("parallel",)),
    )(a_t, lp["w1_t"], lp["s1"], lp["t1"], lp["w2_t"], lp["b2"],
      x_flat, lp["ps"], lp["pt"])
    return out.reshape(C, B, H, W)


# ----------------------------------------------------------------------------
# One-time parameter folding (BN, bias, weight layout, deconv->subpixel)
# ----------------------------------------------------------------------------
def bn_fold(bn, conv_bias=None):
    s = bn["gamma"] / jnp.sqrt(bn["var"] + BN_EPS)
    t = bn["beta"] - bn["mean"] * s
    if conv_bias is not None:
        t = t + conv_bias * s
    return s, t


def _fold_conv(w, bn):
    Cout = w.shape[0]
    s, t = bn_fold(bn)
    return dict(w_t=w.reshape(Cout, -1).astype(jnp.bfloat16),
                s=s.reshape(Cout, 1).astype(jnp.float32),
                t=t.reshape(Cout, 1).astype(jnp.float32))


def _fold_res(p, post_bn=None):
    d = p["w1"].shape[0]
    s1, t1 = bn_fold(p["bn"], conv_bias=p["b1"])
    if post_bn is None:
        ps, pt = jnp.ones((d,)), jnp.zeros((d,))
    else:
        ps, pt = bn_fold(post_bn)
    return dict(
        w1_t=p["w1"].reshape(d, -1).astype(jnp.bfloat16),
        s1=s1.reshape(d, 1).astype(jnp.float32),
        t1=t1.reshape(d, 1).astype(jnp.float32),
        w2_t=p["w2"].reshape(d, d).astype(jnp.bfloat16),
        b2=p["b2"].reshape(d, 1).astype(jnp.float32),
        ps=ps.reshape(d, 1).astype(jnp.float32),
        pt=pt.reshape(d, 1).astype(jnp.float32),
    )


def _fold_deconv(w, bn):
    """ConvTranspose2d(k=4,s=2,p=1) -> stride-1 3x3 conv with 4*Cout channels.

    For output parity p (per spatial dim) and 3-tap window offset j in {0,1,2}
    (input offset j-1 relative to the output's base pixel):
        p=0: j=0 -> k=3, j=1 -> k=1   (even output rows/cols)
        p=1: j=1 -> k=2, j=2 -> k=0   (odd  output rows/cols)
    all other taps are structurally zero.  w is PyTorch IOHW (Cin,Cout,KH,KW).
    """
    Cin, Cout = w.shape[:2]
    w_eff = jnp.zeros((2, 2, Cout, Cin, 3, 3), jnp.float32)
    kmap = ((0, 0, 3), (0, 1, 1), (1, 1, 2), (1, 2, 0))   # (parity, j, k)
    for py, jy, khv in kmap:
        for px, jx, kwv in kmap:
            w_eff = w_eff.at[py, px, :, :, jy, jx].set(w[:, :, khv, kwv].T)
    w_eff = w_eff.reshape(4 * Cout, Cin * 9)
    if bn is None:
        s, t = jnp.ones((Cout,)), jnp.zeros((Cout,))
    else:
        s, t = bn_fold(bn)
    return dict(
        w_t=w_eff.astype(jnp.bfloat16),
        s=jnp.tile(s, 4).reshape(4 * Cout, 1).astype(jnp.float32),
        t=jnp.tile(t, 4).reshape(4 * Cout, 1).astype(jnp.float32),
        cout=Cout)


def fold_params(params):
    e, q = params["enc"], params["dec"]
    return dict(
        conv1=_fold_conv(e["w1"], e["bn1"]),
        conv2=_fold_conv(e["w2"], e["bn2"]),
        conv3=_fold_conv(e["w3"], e["bn3"]),
        enc_res1=_fold_res(e["res1"], post_bn=e["bn_mid"]),
        enc_res2=_fold_res(e["res2"], post_bn=None),
        dec_res1=_fold_res(q["res1"], post_bn=q["bn1"]),
        dec_res2=_fold_res(q["res2"], post_bn=q["bn2"]),
        deconv1=_fold_deconv(q["wt1"], q["bn3"]),
        deconv2=_fold_deconv(q["wt2"], q["bn4"]),
        deconv3=_fold_deconv(q["wt3"], None),
    )


# ----------------------------------------------------------------------------
# CVAE forward (Pallas path) -- activations internal layout: (C, B, H, W)
# ----------------------------------------------------------------------------
def cvae_forward(x_nchw, fp):
    B = x_nchw.shape[0]
    x = x_nchw.transpose(1, 0, 2, 3)                          # (3, B, H, W)
    h = conv_layer(x, fp["conv1"], ksize=4, stride=2, pad=1, act="relu")
    h = conv_layer(h, fp["conv2"], ksize=4, stride=2, pad=1, act="relu")
    h = conv_layer(h, fp["conv3"], ksize=4, stride=2, pad=1, act="relu")
    h = resblock_layer(h, fp["enc_res1"])                     # + bn_mid folded
    h = resblock_layer(h, fp["enc_res2"])
    d, _, f, _ = h.shape
    hid = h.transpose(1, 0, 2, 3).reshape(B, d * f * f)       # encode(): view(-1, d*f*f)

    z = h                                                     # decode(): view back == h
    z = resblock_layer(z, fp["dec_res1"])                     # + dec bn1 folded
    z = resblock_layer(z, fp["dec_res2"])                     # + dec bn2 folded
    z = deconv_layer(z, fp["deconv1"], act="relu")
    z = deconv_layer(z, fp["deconv2"], act="relu")
    z = deconv_layer(z, fp["deconv3"], act="tanh")            # final deconv + tanh
    recon = z.transpose(1, 0, 2, 3)                           # back to NCHW
    return recon, hid


# ----------------------------------------------------------------------------
# Pure-JAX/XLA reference (NCHW, f32) for correctness checking
# ----------------------------------------------------------------------------
def _conv_ref(x, w, stride, padding):
    return jax.lax.conv_general_dilated(
        x, w, window_strides=(stride, stride),
        padding=[(padding, padding)] * 2,
        dimension_numbers=("NCHW", "OIHW", "NCHW"))


def _deconv_ref(x, w, stride, padding):
    K = w.shape[2]
    w_c = jnp.flip(w, (2, 3)).transpose(1, 0, 2, 3)
    pad = K - 1 - padding
    return jax.lax.conv_general_dilated(
        x, w_c, window_strides=(1, 1), padding=[(pad, pad)] * 2,
        lhs_dilation=(stride, stride),
        dimension_numbers=("NCHW", "OIHW", "NCHW"))


def _bn_ref(x, bn):
    s = bn["gamma"] / jnp.sqrt(bn["var"] + BN_EPS)
    t = bn["beta"] - bn["mean"] * s
    return x * s[None, :, None, None] + t[None, :, None, None]


def _res_ref(x, p):
    h = jnp.maximum(x, 0.0)
    h = _conv_ref(h, p["w1"], 1, 1) + p["b1"][None, :, None, None]
    h = jnp.maximum(_bn_ref(h, p["bn"]), 0.0)
    h = _conv_ref(h, p["w2"], 1, 0) + p["b2"][None, :, None, None]
    return x + h


def cvae_forward_ref(x, params):
    e, q = params["enc"], params["dec"]
    B = x.shape[0]
    h = jnp.maximum(_bn_ref(_conv_ref(x, e["w1"], 2, 1), e["bn1"]), 0.0)
    h = jnp.maximum(_bn_ref(_conv_ref(h, e["w2"], 2, 1), e["bn2"]), 0.0)
    h = jnp.maximum(_bn_ref(_conv_ref(h, e["w3"], 2, 1), e["bn3"]), 0.0)
    h = _res_ref(h, e["res1"])
    h = _bn_ref(h, e["bn_mid"])
    h = _res_ref(h, e["res2"])
    d = h.shape[1]
    hid = h.reshape(B, -1)
    z = hid.reshape(B, d, h.shape[2], h.shape[3])
    z = _res_ref(z, q["res1"]); z = _bn_ref(z, q["bn1"])
    z = _res_ref(z, q["res2"]); z = _bn_ref(z, q["bn2"])
    z = jnp.maximum(_bn_ref(_deconv_ref(z, q["wt1"], 2, 1), q["bn3"]), 0.0)
    z = jnp.maximum(_bn_ref(_deconv_ref(z, q["wt2"], 2, 1), q["bn4"]), 0.0)
    z = jnp.tanh(_deconv_ref(z, q["wt3"], 2, 1))
    return z, hid


# ----------------------------------------------------------------------------
# Deterministic parameter construction
# ----------------------------------------------------------------------------
def init_params(key, d):
    keys = iter(jax.random.split(key, 256))

    def nrm(shape, scale=0.05):
        return scale * jax.random.normal(next(keys), shape, jnp.float32)

    def bn(c):
        return dict(gamma=1.0 + nrm((c,)), beta=nrm((c,)), mean=nrm((c,)),
                    var=1.0 + 0.1 * jnp.abs(jax.random.normal(next(keys), (c,),
                                                              jnp.float32)))

    def res(c):
        return dict(w1=nrm((c, c, 3, 3)), b1=nrm((c,)), bn=bn(c),
                    w2=nrm((c, c, 1, 1)), b2=nrm((c,)))

    enc = dict(
        w1=nrm((d, 3, 4, 4)), bn1=bn(d),
        w2=nrm((d, d, 4, 4)), bn2=bn(d),
        w3=nrm((d, d, 4, 4)), bn3=bn(d),
        res1=res(d), bn_mid=bn(d), res2=res(d),
    )
    dec = dict(
        res1=res(d), bn1=bn(d), res2=res(d), bn2=bn(d),
        wt1=nrm((d, d, 4, 4)), bn3=bn(d),      # ConvTranspose weight: (Cin, Cout, KH, KW)
        wt2=nrm((d, d, 4, 4)), bn4=bn(d),
        wt3=nrm((d, 3, 4, 4)),
    )
    return dict(enc=enc, dec=dec)


# ----------------------------------------------------------------------------
if __name__ == "__main__":
    d = 8                                    # self.d
    B = 2
    key = jax.random.PRNGKey(0)
    k_par, k_x = jax.random.split(key)
    params = init_params(k_par, d)
    # f = 4 and three stride-2 convs => input spatial must be 32
    x = jax.random.normal(k_x, (B, 3, 32, 32), jnp.float32)

    fp = fold_params(params)
    fwd = jax.jit(functools.partial(cvae_forward, fp=fp))
    recon, hid = fwd(x)
    jax.block_until_ready(recon)
    jax.block_until_ready(hid)

    assert recon.shape == (B, 3, 32, 32), recon.shape
    assert hid.shape == (B, d * 16), hid.shape

    # Correctness vs. pure-XLA f32 reference (bf16 matmuls => loose tolerance).
    recon_ref, hid_ref = jax.jit(
        functools.partial(cvae_forward_ref, params=params))(x)
    jax.block_until_ready(recon_ref)
    assert float(jnp.max(jnp.abs(hid - hid_ref))) < 3e-2
    assert float(jnp.max(jnp.abs(recon - recon_ref))) < 3e-2

    print("KERNEL_OK")
</pallas_src>

<mosaic_0001>
module attributes {stable_mosaic.version = 11 : i64} {
  func.func @_convmm_kernel(%arg0: i32, %arg1: memref<8x48xbf16, #tpu.memory_space<vmem>>, %arg2: memref<48x256xbf16, #tpu.memory_space<vmem>>, %arg3: memref<8x1xf32, #tpu.memory_space<vmem>>, %arg4: memref<8x1xf32, #tpu.memory_space<vmem>>, %arg5: memref<8x256xf32, #tpu.memory_space<vmem>>) attributes {dimension_semantics = [#tpu.dimension_semantics<parallel>], iteration_bounds = array<i64: 2>, scalar_prefetch = 0 : i64, scratch_operands = 0 : i64, tpu.core_type = #tpu.core_type<tc>, window_params = [{pipeline_mode = #tpu.pipeline_mode<synchronous>, transform_indices = @transform_0, window_bounds = array<i64: 8, 48>}, {transform_indices = @transform_1, window_bounds = array<i64: 48, 256>}, {pipeline_mode = #tpu.pipeline_mode<synchronous>, transform_indices = @transform_2, window_bounds = array<i64: 8, 1>}, {pipeline_mode = #tpu.pipeline_mode<synchronous>, transform_indices = @transform_3, window_bounds = array<i64: 8, 1>}, {transform_indices = @transform_4, window_bounds = array<i64: 8, 256>}]} {
    %c0 = arith.constant 0 : index
    %c0_0 = arith.constant 0 : index
    %0 = vector.load %arg1[%c0, %c0_0] : memref<8x48xbf16, #tpu.memory_space<vmem>>, vector<8x48xbf16>
    %c0_1 = arith.constant 0 : index
    %c0_2 = arith.constant 0 : index
    %1 = vector.load %arg2[%c0_1, %c0_2] : memref<48x256xbf16, #tpu.memory_space<vmem>>, vector<48x256xbf16>
    %cst = arith.constant dense<0.000000e+00> : vector<8x256xf32>
    %2 = tpu.matmul %0, %1, %cst {dimension_numbers = #tpu.dot_dimension_numbers<[1], [0], [0], [1], [0, 0, 1, 1], [], []>} : vector<8x48xbf16>, vector<48x256xbf16>, vector<8x256xf32> -> vector<8x256xf32>
    %c0_3 = arith.constant 0 : index
    %c0_4 = arith.constant 0 : index
    %3 = vector.load %arg3[%c0_3, %c0_4] : memref<8x1xf32, #tpu.memory_space<vmem>>, vector<8x1xf32>
    %4 = vector.broadcast %3 : vector<8x1xf32> to vector<8x256xf32>
    %5 = arith.mulf %2, %4 : vector<8x256xf32>
    %c0_5 = arith.constant 0 : index
    %c0_6 = arith.constant 0 : index
    %6 = vector.load %arg4[%c0_5, %c0_6] : memref<8x1xf32, #tpu.memory_space<vmem>>, vector<8x1xf32>
    %7 = vector.broadcast %6 : vector<8x1xf32> to vector<8x256xf32>
    %8 = arith.addf %5, %7 : vector<8x256xf32>
    %cst_7 = arith.constant 0.000000e+00 : f32
    %9 = vector.broadcast %cst_7 : f32 to vector<8x256xf32>
    %10 = arith.maximumf %8, %9 : vector<8x256xf32>
    %c0_8 = arith.constant 0 : index
    %c0_9 = arith.constant 0 : index
    %11 = vector.load %arg5[%c0_8, %c0_9] : memref<8x256xf32, #tpu.memory_space<vmem>>, vector<8x256xf32>
    tpu.vector_store %arg5[%c0_8, %c0_9], %10 {strides = array<i32>} : memref<8x256xf32, #tpu.memory_space<vmem>>, vector<8x256xf32>,
    return
  }
  func.func @transform_0(%arg0: i32) -> (i32, i32) {
    %c0_i32 = arith.constant 0 : i32
    %c0_i32_0 = arith.constant 0 : i32
    %c0_i32_1 = arith.constant 0 : i32
    return %c0_i32, %c0_i32_0 : i32, i32
  }
  func.func @transform_1(%arg0: i32) -> (i32, i32) {
    %c0_i32 = arith.constant 0 : i32
    %c0_i32_0 = arith.constant 0 : i32
    return %c0_i32, %arg0 : i32, i32
  }
  func.func @transform_2(%arg0: i32) -> (i32, i32) {
    %c0_i32 = arith.constant 0 : i32
    %c0_i32_0 = arith.constant 0 : i32
    %c0_i32_1 = arith.constant 0 : i32
    return %c0_i32, %c0_i32_0 : i32, i32
  }
  func.func @transform_3(%arg0: i32) -> (i32, i32) {
    %c0_i32 = arith.constant 0 : i32
    %c0_i32_0 = arith.constant 0 : i32
    %c0_i32_1 = arith.constant 0 : i32
    return %c0_i32, %c0_i32_0 : i32, i32
  }
  func.func @transform_4(%arg0: i32) -> (i32, i32) {
    %c0_i32 = arith.constant 0 : i32
    %c0_i32_0 = arith.constant 0 : i32
    return %c0_i32, %arg0 : i32, i32
  }
}

module attributes {stable_mosaic.version = 11 : i64} {
  func.func @_convmm_kernel(%arg0: i32, %arg1: memref<8x128xbf16, #tpu.memory_space<vmem>>, %arg2: memref<128x128xbf16, #tpu.memory_space<vmem>>, %arg3: memref<8x1xf32, #tpu.memory_space<vmem>>, %arg4: memref<8x1xf32, #tpu.memory_space<vmem>>, %arg5: memref<8x128xf32, #tpu.memory_space<vmem>>) attributes {dimension_semantics = [#tpu.dimension_semantics<parallel>], iteration_bounds = array<i64: 1>, scalar_prefetch = 0 : i64, scratch_operands = 0 : i64, tpu.core_type = #tpu.core_type<tc>, window_params = [{pipeline_mode = #tpu.pipeline_mode<synchronous>, transform_indices = @transform_0, window_bounds = array<i64: 8, 128>}, {transform_indices = @transform_1, window_bounds = array<i64: 128, 128>}, {pipeline_mode = #tpu.pipeline_mode<synchronous>, transform_indices = @transform_2, window_bounds = array<i64: 8, 1>}, {pipeline_mode = #tpu.pipeline_mode<synchronous>, transform_indices = @transform_3, window_bounds = array<i64: 8, 1>}, {transform_indices = @transform_4, window_bounds = array<i64: 8, 128>}]} {
    %c0 = arith.constant 0 : index
    %c0_0 = arith.constant 0 : index
    %0 = vector.load %arg1[%c0, %c0_0] : memref<8x128xbf16, #tpu.memory_space<vmem>>, vector<8x128xbf16>
    %c0_1 = arith.constant 0 : index
    %c0_2 = arith.constant 0 : index
    %1 = vector.load %arg2[%c0_1, %c0_2] : memref<128x128xbf16, #tpu.memory_space<vmem>>, vector<128x128xbf16>
    %cst = arith.constant dense<0.000000e+00> : vector<8x128xf32>
    %2 = tpu.matmul %0, %1, %cst {dimension_numbers = #tpu.dot_dimension_numbers<[1], [0], [0], [1], [0, 0, 1, 1], [], []>} : vector<8x128xbf16>, vector<128x128xbf16>, vector<8x128xf32> -> vector<8x128xf32>
    %c0_3 = arith.constant 0 : index
    %c0_4 = arith.constant 0 : index
    %3 = vector.load %arg3[%c0_3, %c0_4] : memref<8x1xf32, #tpu.memory_space<vmem>>, vector<8x1xf32>
    %4 = vector.broadcast %3 : vector<8x1xf32> to vector<8x128xf32>
    %5 = arith.mulf %2, %4 : vector<8x128xf32>
    %c0_5 = arith.constant 0 : index
    %c0_6 = arith.constant 0 : index
    %6 = vector.load %arg4[%c0_5, %c0_6] : memref<8x1xf32, #tpu.memory_space<vmem>>, vector<8x1xf32>
    %7 = vector.broadcast %6 : vector<8x1xf32> to vector<8x128xf32>
    %8 = arith.addf %5, %7 : vector<8x128xf32>
    %cst_7 = arith.constant 0.000000e+00 : f32
    %9 = vector.broadcast %cst_7 : f32 to vector<8x128xf32>
    %10 = arith.maximumf %8, %9 : vector<8x128xf32>
    %c0_8 = arith.constant 0 : index
    %c0_9 = arith.constant 0 : index
    %11 = vector.load %arg5[%c0_8, %c0_9] : memref<8x128xf32, #tpu.memory_space<vmem>>, vector<8x128xf32>
    tpu.vector_store %arg5[%c0_8, %c0_9], %10 {strides = array<i32>} : memref<8x128xf32, #tpu.memory_space<vmem>>, vector<8x128xf32>,
    return
  }
  func.func @transform_0(%arg0: i32) -> (i32, i32) {
    %c0_i32 = arith.constant 0 : i32
    %c0_i32_0 = arith.constant 0 : i32
    %c0_i32_1 = arith.constant 0 : i32
    return %c0_i32, %c0_i32_0 : i32, i32
  }
  func.func @transform_1(%arg0: i32) -> (i32, i32) {
    %c0_i32 = arith.constant 0 : i32
    %c0_i32_0 = arith.constant 0 : i32
    return %c0_i32, %arg0 : i32, i32
  }
  func.func @transform_2(%arg0: i32) -> (i32, i32) {
    %c0_i32 = arith.constant 0 : i32
    %c0_i32_0 = arith.constant 0 : i32
    %c0_i32_1 = arith.constant 0 : i32
    return %c0_i32, %c0_i32_0 : i32, i32
  }
  func.func @transform_3(%arg0: i32) -> (i32, i32) {
    %c0_i32 = arith.constant 0 : i32
    %c0_i32_0 = arith.constant 0 : i32
    %c0_i32_1 = arith.constant 0 : i32
    return %c0_i32, %c0_i32_0 : i32, i32
  }
  func.func @transform_4(%arg0: i32) -> (i32, i32) {
    %c0_i32 = arith.constant 0 : i32
    %c0_i32_0 = arith.constant 0 : i32
    return %c0_i32, %arg0 : i32, i32
  }
}

module attributes {stable_mosaic.version = 11 : i64} {
  func.func @_convmm_kernel(%arg0: i32, %arg1: memref<8x128xbf16, #tpu.memory_space<vmem>>, %arg2: memref<128x32xbf16, #tpu.memory_space<vmem>>, %arg3: memref<8x1xf32, #tpu.memory_space<vmem>>, %arg4: memref<8x1xf32, #tpu.memory_space<vmem>>, %arg5: memref<8x32xf32, #tpu.memory_space<vmem>>) attributes {dimension_semantics = [#tpu.dimension_semantics<parallel>], iteration_bounds = array<i64: 1>, scalar_prefetch = 0 : i64, scratch_operands = 0 : i64, tpu.core_type = #tpu.core_type<tc>, window_params = [{pipeline_mode = #tpu.pipeline_mode<synchronous>, transform_indices = @transform_0, window_bounds = array<i64: 8, 128>}, {transform_indices = @transform_1, window_bounds = array<i64: 128, 32>}, {pipeline_mode = #tpu.pipeline_mode<synchronous>, transform_indices = @transform_2, window_bounds = array<i64: 8, 1>}, {pipeline_mode = #tpu.pipeline_mode<synchronous>, transform_indices = @transform_3, window_bounds = array<i64: 8, 1>}, {transform_indices = @transform_4, window_bounds = array<i64: 8, 32>}]} {
    %c0 = arith.constant 0 : index
    %c0_0 = arith.constant 0 : index
    %0 = vector.load %arg1[%c0, %c0_0] : memref<8x128xbf16, #tpu.memory_space<vmem>>, vector<8x128xbf16>
    %c0_1 = arith.constant 0 : index
    %c0_2 = arith.constant 0 : index
    %1 = vector.load %arg2[%c0_1, %c0_2] : memref<128x32xbf16, #tpu.memory_space<vmem>>, vector<128x32xbf16>
    %cst = arith.constant dense<0.000000e+00> : vector<8x32xf32>
    %2 = tpu.matmul %0, %1, %cst {dimension_numbers = #tpu.dot_dimension_numbers<[1], [0], [0], [1], [0, 0, 1, 1], [], []>} : vector<8x128xbf16>, vector<128x32xbf16>, vector<8x32xf32> -> vector<8x32xf32>
    %c0_3 = arith.constant 0 : index
    %c0_4 = arith.constant 0 : index
    %3 = vector.load %arg3[%c0_3, %c0_4] : memref<8x1xf32, #tpu.memory_space<vmem>>, vector<8x1xf32>
    %4 = vector.broadcast %3 : vector<8x1xf32> to vector<8x32xf32>
    %5 = arith.mulf %2, %4 : vector<8x32xf32>
    %c0_5 = arith.constant 0 : index
    %c0_6 = arith.constant 0 : index
    %6 = vector.load %arg4[%c0_5, %c0_6] : memref<8x1xf32, #tpu.memory_space<vmem>>, vector<8x1xf32>
    %7 = vector.broadcast %6 : vector<8x1xf32> to vector<8x32xf32>
    %8 = arith.addf %5, %7 : vector<8x32xf32>
    %cst_7 = arith.constant 0.000000e+00 : f32
    %9 = vector.broadcast %cst_7 : f32 to vector<8x32xf32>
    %10 = arith.maximumf %8, %9 : vector<8x32xf32>
    %c0_8 = arith.constant 0 : index
    %c0_9 = arith.constant 0 : index
    %11 = vector.load %arg5[%c0_8, %c0_9] : memref<8x32xf32, #tpu.memory_space<vmem>>, vector<8x32xf32>
    tpu.vector_store %arg5[%c0_8, %c0_9], %10 {strides = array<i32>} : memref<8x32xf32, #tpu.memory_space<vmem>>, vector<8x32xf32>,
    return
  }
  func.func @transform_0(%arg0: i32) -> (i32, i32) {
    %c0_i32 = arith.constant 0 : i32
    %c0_i32_0 = arith.constant 0 : i32
    %c0_i32_1 = arith.constant 0 : i32
    return %c0_i32, %c0_i32_0 : i32, i32
  }
  func.func @transform_1(%arg0: i32) -> (i32, i32) {
    %c0_i32 = arith.constant 0 : i32
    %c0_i32_0 = arith.constant 0 : i32
    return %c0_i32, %arg0 : i32, i32
  }
  func.func @transform_2(%arg0: i32) -> (i32, i32) {
    %c0_i32 = arith.constant 0 : i32
    %c0_i32_0 = arith.constant 0 : i32
    %c0_i32_1 = arith.constant 0 : i32
    return %c0_i32, %c0_i32_0 : i32, i32
  }
  func.func @transform_3(%arg0: i32) -> (i32, i32) {
    %c0_i32 = arith.constant 0 : i32
    %c0_i32_0 = arith.constant 0 : i32
    %c0_i32_1 = arith.constant 0 : i32
    return %c0_i32, %c0_i32_0 : i32, i32
  }
  func.func @transform_4(%arg0: i32) -> (i32, i32) {
    %c0_i32 = arith.constant 0 : i32
    %c0_i32_0 = arith.constant 0 : i32
    return %c0_i32, %arg0 : i32, i32
  }
}

module attributes {stable_mosaic.version = 11 : i64} {
  func.func @_resblock_kernel(%arg0: i32, %arg1: memref<72x32xbf16, #tpu.memory_space<vmem>>, %arg2: memref<8x72xbf16, #tpu.memory_space<vmem>>, %arg3: memref<8x1xf32, #tpu.memory_space<vmem>>, %arg4: memref<8x1xf32, #tpu.memory_space<vmem>>, %arg5: memref<8x8xbf16, #tpu.memory_space<vmem>>, %arg6: memref<8x1xf32, #tpu.memory_space<vmem>>, %arg7: memref<8x32xf32, #tpu.memory_space<vmem>>, %arg8: memref<8x1xf32, #tpu.memory_space<vmem>>, %arg9: memref<8x1xf32, #tpu.memory_space<vmem>>, %arg10: memref<8x32xf32, #tpu.memory_space<vmem>>) attributes {dimension_semantics = [#tpu.dimension_semantics<parallel>], iteration_bounds = array<i64: 1>, scalar_prefetch = 0 : i64, scratch_operands = 0 : i64, tpu.core_type = #tpu.core_type<tc>, window_params = [{transform_indices = @transform_0, window_bounds = array<i64: 72, 32>}, {pipeline_mode = #tpu.pipeline_mode<synchronous>, transform_indices = @transform_1, window_bounds = array<i64: 8, 72>}, {pipeline_mode = #tpu.pipeline_mode<synchronous>, transform_indices = @transform_2, window_bounds = array<i64: 8, 1>}, {pipeline_mode = #tpu.pipeline_mode<synchronous>, transform_indices = @transform_3, window_bounds = array<i64: 8, 1>}, {pipeline_mode = #tpu.pipeline_mode<synchronous>, transform_indices = @transform_4, window_bounds = array<i64: 8, 8>}, {pipeline_mode = #tpu.pipeline_mode<synchronous>, transform_indices = @transform_5, window_bounds = array<i64: 8, 1>}, {transform_indices = @transform_6, window_bounds = array<i64: 8, 32>}, {pipeline_mode = #tpu.pipeline_mode<synchronous>, transform_indices = @transform_7, window_bounds = array<i64: 8, 1>}, {pipeline_mode = #tpu.pipeline_mode<synchronous>, transform_indices = @transform_8, window_bounds = array<i64: 8, 1>}, {transform_indices = @transform_9, window_bounds = array<i64: 8, 32>}]} {
    %c0 = arith.constant 0 : index
    %c0_0 = arith.constant 0 : index
    %0 = vector.load %arg1[%c0, %c0_0] : memref<72x32xbf16, #tpu.memory_space<vmem>>, vector<72x32xbf16>
    %cst = arith.constant 0.000000e+00 : bf16
    %1 = vector.broadcast %cst : bf16 to vector<72x32xbf16>
    %2 = arith.maximumf %0, %1 : vector<72x32xbf16>
    %c0_1 = arith.constant 0 : index
    %c0_2 = arith.constant 0 : index
    %3 = vector.load %arg2[%c0_1, %c0_2] : memref<8x72xbf16, #tpu.memory_space<vmem>>, vector<8x72xbf16>
    %cst_3 = arith.constant dense<0.000000e+00> : vector<8x32xf32>
    %4 = tpu.matmul %3, %2, %cst_3 {dimension_numbers = #tpu.dot_dimension_numbers<[1], [0], [0], [1], [0, 0, 1, 1], [], []>} : vector<8x72xbf16>, vector<72x32xbf16>, vector<8x32xf32> -> vector<8x32xf32>
    %c0_4 = arith.constant 0 : index
    %c0_5 = arith.constant 0 : index
    %5 = vector.load %arg3[%c0_4, %c0_5] : memref<8x1xf32, #tpu.memory_space<vmem>>, vector<8x1xf32>
    %6 = vector.broadcast %5 : vector<8x1xf32> to vector<8x32xf32>
    %7 = arith.mulf %4, %6 : vector<8x32xf32>
    %c0_6 = arith.constant 0 : index
    %c0_7 = arith.constant 0 : index
    %8 = vector.load %arg4[%c0_6, %c0_7] : memref<8x1xf32, #tpu.memory_space<vmem>>, vector<8x1xf32>
    %9 = vector.broadcast %8 : vector<8x1xf32> to vector<8x32xf32>
    %10 = arith.addf %7, %9 : vector<8x32xf32>
    %cst_8 = arith.constant 0.000000e+00 : f32
    %11 = vector.broadcast %cst_8 : f32 to vector<8x32xf32>
    %12 = arith.maximumf %10, %11 : vector<8x32xf32>
    %c0_9 = arith.constant 0 : index
    %c0_10 = arith.constant 0 : index
    %13 = vector.load %arg5[%c0_9, %c0_10] : memref<8x8xbf16, #tpu.memory_space<vmem>>, vector<8x8xbf16>
    %14 = arith.truncf %12 : vector<8x32xf32> to vector<8x32xbf16>
    %cst_11 = arith.constant dense<0.000000e+00> : vector<8x32xf32>
    %15 = tpu.matmul %13, %14, %cst_11 {dimension_numbers = #tpu.dot_dimension_numbers<[1], [0], [0], [1], [0, 0, 1, 1], [], []>} : vector<8x8xbf16>, vector<8x32xbf16>, vector<8x32xf32> -> vector<8x32xf32>
    %c0_12 = arith.constant 0 : index
    %c0_13 = arith.constant 0 : index
    %16 = vector.load %arg6[%c0_12, %c0_13] : memref<8x1xf32, #tpu.memory_space<vmem>>, vector<8x1xf32>
    %17 = vector.broadcast %16 : vector<8x1xf32> to vector<8x32xf32>
    %18 = arith.addf %15, %17 : vector<8x32xf32>
    %c0_14 = arith.constant 0 : index
    %c0_15 = arith.constant 0 : index
    %19 = vector.load %arg7[%c0_14, %c0_15] : memref<8x32xf32, #tpu.memory_space<vmem>>, vector<8x32xf32>
    %20 = arith.addf %19, %18 : vector<8x32xf32>
    %c0_16 = arith.constant 0 : index
    %c0_17 = arith.constant 0 : index
    %21 = vector.load %arg8[%c0_16, %c0_17] : memref<8x1xf32, #tpu.memory_space<vmem>>, vector<8x1xf32>
    %22 = vector.broadcast %21 : vector<8x1xf32> to vector<8x32xf32>
    %23 = arith.mulf %20, %22 : vector<8x32xf32>
    %c0_18 = arith.constant 0 : index
    %c0_19 = arith.constant 0 : index
    %24 = vector.load %arg9[%c0_18, %c0_19] : memref<8x1xf32, #tpu.memory_space<vmem>>, vector<8x1xf32>
    %25 = vector.broadcast %24 : vector<8x1xf32> to vector<8x32xf32>
    %26 = arith.addf %23, %25 : vector<8x32xf32>
    %c0_20 = arith.constant 0 : index
    %c0_21 = arith.constant 0 : index
    %27 = vector.load %arg10[%c0_20, %c0_21] : memref<8x32xf32, #tpu.memory_space<vmem>>, vector<8x32xf32>
    tpu.vector_store %arg10[%c0_20, %c0_21], %26 {strides = array<i32>} : memref<8x32xf32, #tpu.memory_space<vmem>>, vector<8x32xf32>,
    return
  }
  func.func @transform_0(%arg0: i32) -> (i32, i32) {
    %c0_i32 = arith.constant 0 : i32
    %c0_i32_0 = arith.constant 0 : i32
    return %c0_i32, %arg0 : i32, i32
  }
  func.func @transform_1(%arg0: i32) -> (i32, i32) {
    %c0_i32 = arith.constant 0 : i32
    %c0_i32_0 = arith.constant 0 : i32
    %c0_i32_1 = arith.constant 0 : i32
    return %c0_i32, %c0_i32_0 : i32, i32
  }
  func.func @transform_2(%arg0: i32) -> (i32, i32) {
    %c0_i32 = arith.constant 0 : i32
    %c0_i32_0 = arith.constant 0 : i32
    %c0_i32_1 = arith.constant 0 : i32
    return %c0_i32, %c0_i32_0 : i32, i32
  }
  func.func @transform_3(%arg0: i32) -> (i32, i32) {
    %c0_i32 = arith.constant 0 : i32
    %c0_i32_0 = arith.constant 0 : i32
    %c0_i32_1 = arith.constant 0 : i32
    return %c0_i32, %c0_i32_0 : i32, i32
  }
  func.func @transform_4(%arg0: i32) -> (i32, i32) {
    %c0_i32 = arith.constant 0 : i32
    %c0_i32_0 = arith.constant 0 : i32
    %c0_i32_1 = arith.constant 0 : i32
    return %c0_i32, %c0_i32_0 : i32, i32
  }
  func.func @transform_5(%arg0: i32) -> (i32, i32) {
    %c0_i32 = arith.constant 0 : i32
    %c0_i32_0 = arith.constant 0 : i32
    %c0_i32_1 = arith.constant 0 : i32
    return %c0_i32, %c0_i32_0 : i32, i32
  }
  func.func @transform_6(%arg0: i32) -> (i32, i32) {
    %c0_i32 = arith.constant 0 : i32
    %c0_i32_0 = arith.constant 0 : i32
    return %c0_i32, %arg0 : i32, i32
  }
  func.func @transform_7(%arg0: i32) -> (i32, i32) {
    %c0_i32 = arith.constant 0 : i32
    %c0_i32_0 = arith.constant 0 : i32
    %c0_i32_1 = arith.constant 0 : i32
    return %c0_i32, %c0_i32_0 : i32, i32
  }
  func.func @transform_8(%arg0: i32) -> (i32, i32) {
    %c0_i32 = arith.constant 0 : i32
    %c0_i32_0 = arith.constant 0 : i32
    %c0_i32_1 = arith.constant 0 : i32
    return %c0_i32, %c0_i32_0 : i32, i32
  }
  func.func @transform_9(%arg0: i32) -> (i32, i32) {
    %c0_i32 = arith.constant 0 : i32
    %c0_i32_0 = arith.constant 0 : i32
    return %c0_i32, %arg0 : i32, i32
  }
}

module attributes {stable_mosaic.version = 11 : i64} {
  func.func @_convmm_kernel(%arg0: i32, %arg1: memref<32x72xbf16, #tpu.memory_space<vmem>>, %arg2: memref<72x32xbf16, #tpu.memory_space<vmem>>, %arg3: memref<32x1xf32, #tpu.memory_space<vmem>>, %arg4: memref<32x1xf32, #tpu.memory_space<vmem>>, %arg5: memref<32x32xf32, #tpu.memory_space<vmem>>) attributes {dimension_semantics = [#tpu.dimension_semantics<parallel>], iteration_bounds = array<i64: 1>, scalar_prefetch = 0 : i64, scratch_operands = 0 : i64, tpu.core_type = #tpu.core_type<tc>, window_params = [{pipeline_mode = #tpu.pipeline_mode<synchronous>, transform_indices = @transform_0, window_bounds = array<i64: 32, 72>}, {transform_indices = @transform_1, window_bounds = array<i64: 72, 32>}, {pipeline_mode = #tpu.pipeline_mode<synchronous>, transform_indices = @transform_2, window_bounds = array<i64: 32, 1>}, {pipeline_mode = #tpu.pipeline_mode<synchronous>, transform_indices = @transform_3, window_bounds = array<i64: 32, 1>}, {transform_indices = @transform_4, window_bounds = array<i64: 32, 32>}]} {
    %c0 = arith.constant 0 : index
    %c0_0 = arith.constant 0 : index
    %0 = vector.load %arg1[%c0, %c0_0] : memref<32x72xbf16, #tpu.memory_space<vmem>>, vector<32x72xbf16>
    %c0_1 = arith.constant 0 : index
    %c0_2 = arith.constant 0 : index
    %1 = vector.load %arg2[%c0_1, %c0_2] : memref<72x32xbf16, #tpu.memory_space<vmem>>, vector<72x32xbf16>
    %cst = arith.constant dense<0.000000e+00> : vector<32x32xf32>
    %2 = tpu.matmul %0, %1, %cst {dimension_numbers = #tpu.dot_dimension_numbers<[1], [0], [0], [1], [0, 0, 1, 1], [], []>} : vector<32x72xbf16>, vector<72x32xbf16>, vector<32x32xf32> -> vector<32x32xf32>
    %c0_3 = arith.constant 0 : index
    %c0_4 = arith.constant 0 : index
    %3 = vector.load %arg3[%c0_3, %c0_4] : memref<32x1xf32, #tpu.memory_space<vmem>>, vector<32x1xf32>
    %4 = vector.broadcast %3 : vector<32x1xf32> to vector<32x32xf32>
    %5 = arith.mulf %2, %4 : vector<32x32xf32>
    %c0_5 = arith.constant 0 : index
    %c0_6 = arith.constant 0 : index
    %6 = vector.load %arg4[%c0_5, %c0_6] : memref<32x1xf32, #tpu.memory_space<vmem>>, vector<32x1xf32>
    %7 = vector.broadcast %6 : vector<32x1xf32> to vector<32x32xf32>
    %8 = arith.addf %5, %7 : vector<32x32xf32>
    %cst_7 = arith.constant 0.000000e+00 : f32
    %9 = vector.broadcast %cst_7 : f32 to vector<32x32xf32>
    %10 = arith.maximumf %8, %9 : vector<32x32xf32>
    %c0_8 = arith.constant 0 : index
    %c0_9 = arith.constant 0 : index
    %11 = vector.load %arg5[%c0_8, %c0_9] : memref<32x32xf32, #tpu.memory_space<vmem>>, vector<32x32xf32>
    tpu.vector_store %arg5[%c0_8, %c0_9], %10 {strides = array<i32>} : memref<32x32xf32, #tpu.memory_space<vmem>>, vector<32x32xf32>,
    return
  }
  func.func @transform_0(%arg0: i32) -> (i32, i32) {
    %c0_i32 = arith.constant 0 : i32
    %c0_i32_0 = arith.constant 0 : i32
    %c0_i32_1 = arith.constant 0 : i32
    return %c0_i32, %c0_i32_0 : i32, i32
  }
  func.func @transform_1(%arg0: i32) -> (i32, i32) {
    %c0_i32 = arith.constant 0 : i32
    %c0_i32_0 = arith.constant 0 : i32
    return %c0_i32, %arg0 : i32, i32
  }
  func.func @transform_2(%arg0: i32) -> (i32, i32) {
    %c0_i32 = arith.constant 0 : i32
    %c0_i32_0 = arith.constant 0 : i32
    %c0_i32_1 = arith.constant 0 : i32
    return %c0_i32, %c0_i32_0 : i32, i32
  }
  func.func @transform_3(%arg0: i32) -> (i32, i32) {
    %c0_i32 = arith.constant 0 : i32
    %c0_i32_0 = arith.constant 0 : i32
    %c0_i32_1 = arith.constant 0 : i32
    return %c0_i32, %c0_i32_0 : i32, i32
  }
  func.func @transform_4(%arg0: i32) -> (i32, i32) {
    %c0_i32 = arith.constant 0 : i32
    %c0_i32_0 = arith.constant 0 : i32
    return %c0_i32, %arg0 : i32, i32
  }
}

module attributes {stable_mosaic.version = 11 : i64} {
  func.func @_convmm_kernel(%arg0: i32, %arg1: memref<32x72xbf16, #tpu.memory_space<vmem>>, %arg2: memref<72x128xbf16, #tpu.memory_space<vmem>>, %arg3: memref<32x1xf32, #tpu.memory_space<vmem>>, %arg4: memref<32x1xf32, #tpu.memory_space<vmem>>, %arg5: memref<32x128xf32, #tpu.memory_space<vmem>>) attributes {dimension_semantics = [#tpu.dimension_semantics<parallel>], iteration_bounds = array<i64: 1>, scalar_prefetch = 0 : i64, scratch_operands = 0 : i64, tpu.core_type = #tpu.core_type<tc>, window_params = [{pipeline_mode = #tpu.pipeline_mode<synchronous>, transform_indices = @transform_0, window_bounds = array<i64: 32, 72>}, {transform_indices = @transform_1, window_bounds = array<i64: 72, 128>}, {pipeline_mode = #tpu.pipeline_mode<synchronous>, transform_indices = @transform_2, window_bounds = array<i64: 32, 1>}, {pipeline_mode = #tpu.pipeline_mode<synchronous>, transform_indices = @transform_3, window_bounds = array<i64: 32, 1>}, {transform_indices = @transform_4, window_bounds = array<i64: 32, 128>}]} {
    %c0 = arith.constant 0 : index
    %c0_0 = arith.constant 0 : index
    %0 = vector.load %arg1[%c0, %c0_0] : memref<32x72xbf16, #tpu.memory_space<vmem>>, vector<32x72xbf16>
    %c0_1 = arith.constant 0 : index
    %c0_2 = arith.constant 0 : index
    %1 = vector.load %arg2[%c0_1, %c0_2] : memref<72x128xbf16, #tpu.memory_space<vmem>>, vector<72x128xbf16>
    %cst = arith.constant dense<0.000000e+00> : vector<32x128xf32>
    %2 = tpu.matmul %0, %1, %cst {dimension_numbers = #tpu.dot_dimension_numbers<[1], [0], [0], [1], [0, 0, 1, 1], [], []>} : vector<32x72xbf16>, vector<72x128xbf16>, vector<32x128xf32> -> vector<32x128xf32>
    %c0_3 = arith.constant 0 : index
    %c0_4 = arith.constant 0 : index
    %3 = vector.load %arg3[%c0_3, %c0_4] : memref<32x1xf32, #tpu.memory_space<vmem>>, vector<32x1xf32>
    %4 = vector.broadcast %3 : vector<32x1xf32> to vector<32x128xf32>
    %5 = arith.mulf %2, %4 : vector<32x128xf32>
    %c0_5 = arith.constant 0 : index
    %c0_6 = arith.constant 0 : index
    %6 = vector.load %arg4[%c0_5, %c0_6] : memref<32x1xf32, #tpu.memory_space<vmem>>, vector<32x1xf32>
    %7 = vector.broadcast %6 : vector<32x1xf32> to vector<32x128xf32>
    %8 = arith.addf %5, %7 : vector<32x128xf32>
    %cst_7 = arith.constant 0.000000e+00 : f32
    %9 = vector.broadcast %cst_7 : f32 to vector<32x128xf32>
    %10 = arith.maximumf %8, %9 : vector<32x128xf32>
    %c0_8 = arith.constant 0 : index
    %c0_9 = arith.constant 0 : index
    %11 = vector.load %arg5[%c0_8, %c0_9] : memref<32x128xf32, #tpu.memory_space<vmem>>, vector<32x128xf32>
    tpu.vector_store %arg5[%c0_8, %c0_9], %10 {strides = array<i32>} : memref<32x128xf32, #tpu.memory_space<vmem>>, vector<32x128xf32>,
    return
  }
  func.func @transform_0(%arg0: i32) -> (i32, i32) {
    %c0_i32 = arith.constant 0 : i32
    %c0_i32_0 = arith.constant 0 : i32
    %c0_i32_1 = arith.constant 0 : i32
    return %c0_i32, %c0_i32_0 : i32, i32
  }
  func.func @transform_1(%arg0: i32) -> (i32, i32) {
    %c0_i32 = arith.constant 0 : i32
    %c0_i32_0 = arith.constant 0 : i32
    return %c0_i32, %arg0 : i32, i32
  }
  func.func @transform_2(%arg0: i32) -> (i32, i32) {
    %c0_i32 = arith.constant 0 : i32
    %c0_i32_0 = arith.constant 0 : i32
    %c0_i32_1 = arith.constant 0 : i32
    return %c0_i32, %c0_i32_0 : i32, i32
  }
  func.func @transform_3(%arg0: i32) -> (i32, i32) {
    %c0_i32 = arith.constant 0 : i32
    %c0_i32_0 = arith.constant 0 : i32
    %c0_i32_1 = arith.constant 0 : i32
    return %c0_i32, %c0_i32_0 : i32, i32
  }
  func.func @transform_4(%arg0: i32) -> (i32, i32) {
    %c0_i32 = arith.constant 0 : i32
    %c0_i32_0 = arith.constant 0 : i32
    return %c0_i32, %arg0 : i32, i32
  }
}

module attributes {stable_mosaic.version = 11 : i64} {
  func.func @_convmm_kernel(%arg0: i32, %arg1: memref<12x72xbf16, #tpu.memory_space<vmem>>, %arg2: memref<72x256xbf16, #tpu.memory_space<vmem>>, %arg3: memref<12x1xf32, #tpu.memory_space<vmem>>, %arg4: memref<12x1xf32, #tpu.memory_space<vmem>>, %arg5: memref<12x256xf32, #tpu.memory_space<vmem>>) attributes {dimension_semantics = [#tpu.dimension_semantics<parallel>], iteration_bounds = array<i64: 2>, scalar_prefetch = 0 : i64, scratch_operands = 0 : i64, tpu.core_type = #tpu.core_type<tc>, window_params = [{pipeline_mode = #tpu.pipeline_mode<synchronous>, transform_indices = @transform_0, window_bounds = array<i64: 12, 72>}, {transform_indices = @transform_1, window_bounds = array<i64: 72, 256>}, {pipeline_mode = #tpu.pipeline_mode<synchronous>, transform_indices = @transform_2, window_bounds = array<i64: 12, 1>}, {pipeline_mode = #tpu.pipeline_mode<synchronous>, transform_indices = @transform_3, window_bounds = array<i64: 12, 1>}, {transform_indices = @transform_4, window_bounds = array<i64: 12, 256>}]} {
    %c0 = arith.constant 0 : index
    %c0_0 = arith.constant 0 : index
    %0 = vector.load %arg1[%c0, %c0_0] : memref<12x72xbf16, #tpu.memory_space<vmem>>, vector<12x72xbf16>
    %c0_1 = arith.constant 0 : index
    %c0_2 = arith.constant 0 : index
    %1 = vector.load %arg2[%c0_1, %c0_2] : memref<72x256xbf16, #tpu.memory_space<vmem>>, vector<72x256xbf16>
    %cst = arith.constant dense<0.000000e+00> : vector<12x256xf32>
    %2 = tpu.matmul %0, %1, %cst {dimension_numbers = #tpu.dot_dimension_numbers<[1], [0], [0], [1], [0, 0, 1, 1], [], []>} : vector<12x72xbf16>, vector<72x256xbf16>, vector<12x256xf32> -> vector<12x256xf32>
    %c0_3 = arith.constant 0 : index
    %c0_4 = arith.constant 0 : index
    %3 = vector.load %arg3[%c0_3, %c0_4] : memref<12x1xf32, #tpu.memory_space<vmem>>, vector<12x1xf32>
    %4 = vector.broadcast %3 : vector<12x1xf32> to vector<12x256xf32>
    %5 = arith.mulf %2, %4 : vector<12x256xf32>
    %c0_5 = arith.constant 0 : index
    %c0_6 = arith.constant 0 : index
    %6 = vector.load %arg4[%c0_5, %c0_6] : memref<12x1xf32, #tpu.memory_space<vmem>>, vector<12x1xf32>
    %7 = vector.broadcast %6 : vector<12x1xf32> to vector<12x256xf32>
    %8 = arith.addf %5, %7 : vector<12x256xf32>
    %9 = math.tanh %8 : vector<12x256xf32>
    %c0_7 = arith.constant 0 : index
    %c0_8 = arith.constant 0 : index
    %10 = vector.load %arg5[%c0_7, %c0_8] : memref<12x256xf32, #tpu.memory_space<vmem>>, vector<12x256xf32>
    tpu.vector_store %arg5[%c0_7, %c0_8], %9 {strides = array<i32>} : memref<12x256xf32, #tpu.memory_space<vmem>>, vector<12x256xf32>,
    return
  }
  func.func @transform_0(%arg0: i32) -> (i32, i32) {
    %c0_i32 = arith.constant 0 : i32
    %c0_i32_0 = arith.constant 0 : i32
    %c0_i32_1 = arith.constant 0 : i32
    return %c0_i32, %c0_i32_0 : i32, i32
  }
  func.func @transform_1(%arg0: i32) -> (i32, i32) {
    %c0_i32 = arith.constant 0 : i32
    %c0_i32_0 = arith.constant 0 : i32
    return %c0_i32, %arg0 : i32, i32
  }
  func.func @transform_2(%arg0: i32) -> (i32, i32) {
    %c0_i32 = arith.constant 0 : i32
    %c0_i32_0 = arith.constant 0 : i32
    %c0_i32_1 = arith.constant 0 : i32
    return %c0_i32, %c0_i32_0 : i32, i32
  }
  func.func @transform_3(%arg0: i32) -> (i32, i32) {
    %c0_i32 = arith.constant 0 : i32
    %c0_i32_0 = arith.constant 0 : i32
    %c0_i32_1 = arith.constant 0 : i32
    return %c0_i32, %c0_i32_0 : i32, i32
  }
  func.func @transform_4(%arg0: i32) -> (i32, i32) {
    %c0_i32 = arith.constant 0 : i32
    %c0_i32_0 = arith.constant 0 : i32
    return %c0_i32, %arg0 : i32, i32
  }
}

</mosaic_0001>

<llo_original>
// kernel: cvae_forward.10
$region0: #{cvae_forward.10}
  #allocation0 [shape = 'u32[]', space=smem, size = 0x4, offset = 0x4, fixed_abs, tag = 'smem constant byte address 0x4 - core index']
  #allocation1 [shape = 'u32[144,128]{1,0:T(1,128)}', space=vmem, size = 0x12000, scoped, tag = 'internal scratch']
  %s0 = inlined_call_operand.vmem [shape: bf16[8,48], index: 0, kind: input, shape index: {}]
  %s1 = inlined_call_operand.vmem [shape: bf16[48,512], index: 1, kind: input, shape index: {}]
  %s2 = inlined_call_operand.vmem [shape: f32[8,1], index: 2, kind: input, shape index: {}]
  %s3 = inlined_call_operand.vmem [shape: f32[8,1], index: 3, kind: input, shape index: {}]
  %s4 = inlined_call_operand.vmem [shape: f32[8,512], index: 4, kind: output, shape index: {}]
  %s5 = sld [smem:[#allocation0]]
  $region87: #{cvae_forward.10} parent=0
    _
  %s7 = ssub.s32 1, %s5
  %s8 = scalar_select 0, %s7, %s5
  $region1: #{cvae_forward.10} parent=0
    #allocation2 [shape = 'u8[49152]{0}', space=vmem, size = 0xc000, scoped, tag = 'input window, operand 1']
    loop: start=0, step=1, limit=4
    $region2: #{cvae_forward.10} parent=1 // loop_pre_header
      _
    $region3: #{cvae_forward.10} parent=1 // loop_header
      %s10 = sphi 0, %s14
      %p11 = scmp.ge.s32.totalorder %s10, 4
      %s18 = sphi 0, %s18
      %s20 = sphi 0, %s18
      %s21 = sphi 0, %s20
      %s35 = sphi 0, %s21
      %s41 = sphi 0, %s43
      %s44 = sphi 0, %s41
      %s45 = sphi 0, %s44
      %s61 = sphi 0, %s45
      %s65 = sphi 0, %s65
      %s67 = sphi 0, %s65
      %s68 = sphi 0, %s67
      %s82 = sphi 0, %s68
      %s86 = sphi 0, %s86
      %s88 = sphi 0, %s86
      %s89 = sphi 0, %s88
      %s103 = sphi 0, %s89
      %s109 = sphi 0, %s111
      %s112 = sphi 0, %s109
      %s113 = sphi 0, %s112
      %s129 = sphi 0, %s113
    $region4: #{cvae_forward.10} parent=1 // loop_header_branch
      %13 = sbr.rel (%p11) target = $region8
    $region5: #{cvae_forward.10} parent=1 // loop_body
      %s15 = ssub.s32 %s10, 1
      %s16 = ssub.s32 %s10, 2
      %s17 = sadd.s32 %s10, 1
      %s19 = sadd.s32 %s18, 1
      %p22 = scmp.eq.s32.totalorder %s10, 1
      %p23 = scmp.ne.s32.totalorder %s18, %s20
      %p24 = scmp.eq.s32.totalorder %s10, 0
      %p25 = por %p23, %p24
      %p26 = scmp.ne.s32.totalorder %s18, %s20
      %p27 = scmp.eq.s32.totalorder %s15, 1
      %p28 = por %p26, %p27
      %p29 = scmp.ne.s32.totalorder %s20, %s21
      %p30 = scmp.eq.s32.totalorder %s15, 0
      %p31 = por %p29, %p30
      %p32 = scmp.ne.s32.totalorder %s20, %s21
      %p33 = scmp.eq.s32.totalorder %s16, 1
      %p34 = por %p32, %p33
      %p36 = scmp.ne.s32.totalorder %s21, %s35
      %p37 = scmp.eq.s32.totalorder %s16, 0
      %p38 = por %p36, %p37
      %s39 = ssub.s32 %s10, %s17
      %p40 = scmp.eq.s32.totalorder %s39, 0
      %s42 = sadd.s32 %s41, 1
      %s43 = scalar_select %p40, %s41, %s42
      %p46 = pneg %p40
      %p47 = scmp.eq.s32.totalorder %s10, 1
      %p48 = por %p46, %p47
      %p49 = scmp.ne.s32.totalorder %s41, %s44
      %p50 = scmp.eq.s32.totalorder %s10, 0
      %p51 = por %p49, %p50
      %p52 = scmp.ne.s32.totalorder %s41, %s44
      %p53 = scmp.eq.s32.totalorder %s15, 1
      %p54 = por %p52, %p53
      %p55 = scmp.ne.s32.totalorder %s44, %s45
      %p56 = scmp.eq.s32.totalorder %s15, 0
      %p57 = por %p55, %p56
      %p58 = scmp.ne.s32.totalorder %s44, %s45
      %p59 = scmp.eq.s32.totalorder %s16, 1
      %p60 = por %p58, %p59
      %p62 = scmp.ne.s32.totalorder %s45, %s61
      %p63 = scmp.eq.s32.totalorder %s16, 0
      %p64 = por %p62, %p63
      %s66 = sadd.s32 %s65, 1
      %p69 = scmp.eq.s32.totalorder %s10, 1
      %p70 = scmp.ne.s32.totalorder %s65, %s67
      %p71 = scmp.eq.s32.totalorder %s10, 0
      %p72 = por %p70, %p71
      %p73 = scmp.ne.s32.totalorder %s65, %s67
      %p74 = scmp.eq.s32.totalorder %s15, 1
      %p75 = por %p73, %p74
      %p76 = scmp.ne.s32.totalorder %s67, %s68
      %p77 = scmp.eq.s32.totalorder %s15, 0
      %p78 = por %p76, %p77
      %p79 = scmp.ne.s32.totalorder %s67, %s68
      %p80 = scmp.eq.s32.totalorder %s16, 1
      %p81 = por %p79, %p80
      %p83 = scmp.ne.s32.totalorder %s68, %s82
      %p84 = scmp.eq.s32.totalorder %s16, 0
      %p85 = por %p83, %p84
      %s87 = sadd.s32 %s86, 1
      %p90 = scmp.eq.s32.totalorder %s10, 1
      %p91 = scmp.ne.s32.totalorder %s86, %s88
      %p92 = scmp.eq.s32.totalorder %s10, 0
      %p93 = por %p91, %p92
      %p94 = scmp.ne.s32.totalorder %s86, %s88
      %p95 = scmp.eq.s32.totalorder %s15, 1
      %p96 = por %p94, %p95
      %p97 = scmp.ne.s32.totalorder %s88, %s89
      %p98 = scmp.eq.s32.totalorder %s15, 0
      %p99 = por %p97, %p98
      %p100 = scmp.ne.s32.totalorder %s88, %s89
      %p101 = scmp.eq.s32.totalorder %s16, 1
      %p102 = por %p100, %p101
      %p104 = scmp.ne.s32.totalorder %s89, %s103
      %p105 = scmp.eq.s32.totalorder %s16, 0
      %p106 = por %p104, %p105
      %s107 = ssub.s32 %s10, %s17
      %p108 = scmp.eq.s32.totalorder %s107, 0
      %s110 = sadd.s32 %s109, 1
      %s111 = scalar_select %p108, %s109, %s110
      %p114 = pneg %p108
      %p115 = scmp.eq.s32.totalorder %s10, 1
      %p116 = por %p114, %p115
      %p117 = scmp.ne.s32.totalorder %s109, %s112
      %p118 = scmp.eq.s32.totalorder %s10, 0
      %p119 = por %p117, %p118
      %p120 = scmp.ne.s32.totalorder %s109, %s112
      %p121 = scmp.eq.s32.totalorder %s15, 1
      %p122 = por %p120, %p121
      %p123 = scmp.ne.s32.totalorder %s112, %s113
      %p124 = scmp.eq.s32.totalorder %s15, 0
      %p125 = por %p123, %p124
      %p126 = scmp.ne.s32.totalorder %s112, %s113
      %p127 = scmp.eq.s32.totalorder %s16, 1
      %p128 = por %p126, %p127
      %p130 = scmp.ne.s32.totalorder %s113, %s129
      %p131 = scmp.eq.s32.totalorder %s16, 0
      %p132 = por %p130, %p131
      %p133 = scmp.le.s32.totalorder 1, %s10
      %p134 = scmp.lt.s32.totalorder %s10, 3
      %p135 = pnand %p133, %p134
      %p136 = pneg %p135
      // Predicated region
      $region9: #{cvae_forward.10} parent=5 // pred_check
        _
      $region10: #{cvae_forward.10} parent=5 // pred_check_branch
        %138 = sbr.rel (%p135) target = $region12
      $region11: #{cvae_forward.10} parent=5 // pred_region
        %s139 = ssub.s32 %s10, 1
        // Predicated region
        $region13: #{cvae_forward.10} parent=11 // pred_check
          %p140 = pneg %p31
        $region14: #{cvae_forward.10} parent=11 // pred_check_branch
          %142 = sbr.rel (%p140) target = $region16
        $region15: #{cvae_forward.10} parent=11 // pred_region
          _
        $region16: #{cvae_forward.10} parent=11 // pred_fallthru
          _
        // Predicated region
        $region17: #{cvae_forward.10} parent=11 // pred_check
          %p143 = pneg %p78
        $region18: #{cvae_forward.10} parent=11 // pred_check_branch
          %145 = sbr.rel (%p143) target = $region20
        $region19: #{cvae_forward.10} parent=11 // pred_region
          _
        $region20: #{cvae_forward.10} parent=11 // pred_fallthru
          _
        // Predicated region
        $region21: #{cvae_forward.10} parent=11 // pred_check
          %p146 = pneg %p99
        $region22: #{cvae_forward.10} parent=11 // pred_check_branch
          %148 = sbr.rel (%p146) target = $region24
        $region23: #{cvae_forward.10} parent=11 // pred_region
          _
        $region24: #{cvae_forward.10} parent=11 // pred_fallthru
          _
      $region12: #{cvae_forward.10} parent=5 // pred_fallthru
        _
      %p149 = scmp.lt.s32.totalorder %s10, 2
      // Predicated region
      $region25: #{cvae_forward.10} parent=5 // pred_check
        %p150 = pneg %p149
      $region26: #{cvae_forward.10} parent=5 // pred_check_branch
        %152 = sbr.rel (%p150) target = $region28
      $region27: #{cvae_forward.10} parent=5 // pred_region
        // Predicated region
        $region29: #{cvae_forward.10} parent=27 // pred_check
          %p153 = pneg %p51
        $region30: #{cvae_forward.10} parent=27 // pred_check_branch
          %155 = sbr.rel (%p153) target = $region32
        $region31: #{cvae_forward.10} parent=27 // pred_region
          %s156 = sand.u32 %s41, 1
          %s157 = sand.u32 %s41, 1
          %s158 = smul.addr %s157, 48
          %s159 = scalar_lea.vmem [#allocation2], %s158
          %s160 = smul.u32 2, %s10
          %s161 = smul.addr %s160, 4
          %s162 = scalar_lea.vmem %s1, %s161
          // Predicated region
          $region33: #{cvae_forward.10} parent=31 // pred_check
            _
          $region34: #{cvae_forward.10} parent=31 // pred_check_branch
            %164 = sbr.rel (0) target = $region36
          $region35: #{cvae_forward.10} parent=31 // pred_region
            // Predicated region
            $region37: #{cvae_forward.10} parent=35 // pred_check
              _
            $region38: #{cvae_forward.10} parent=35 // pred_check_branch
              %166 = sbr.rel (0) target = $region40
            $region39: #{cvae_forward.10} parent=35 // pred_region
              // Predicated region
              $region52: #{cvae_forward.10} parent=39 // pred_check
                _
              $region53: #{cvae_forward.10} parent=39 // pred_check_branch
                %191 = sbr.rel (0) target = $region55
              $region54: #{cvae_forward.10} parent=39 // pred_region
                loop: start=0, step=1, limit=1
                $region56: #{cvae_forward.10} parent=54 // loop_pre_header
                  _
                $region57: #{cvae_forward.10} parent=54 // loop_header
                  %s193 = sphi 0, %s197
                  %p194 = scmp.ge.s32.totalorder %s193, 1
                  %s198 = sphi %s162, %s162
                  %s199 = sphi %s159, %s159
                $region58: #{cvae_forward.10} parent=54 // loop_header_branch
                  %196 = sbr.rel (%p194) target = $region62
                $region59: #{cvae_forward.10} parent=54 // loop_body
                  %v200 = vld [vmem:[%s198] sm:$0xff]
                  %201 = vst [vmem:[%s199] sm:$0xff] %v200
                  %v202 = vld [vmem:[%s198 + $0x10] sm:$0xff]
                  %203 = vst [vmem:[%s199 + $0x8] sm:$0xff] %v202
                  %v204 = vld [vmem:[%s198 + $0x20] sm:$0xff]
                  %205 = vst [vmem:[%s199 + $0x10] sm:$0xff] %v204
                  %v206 = vld [vmem:[%s198 + $0x30] sm:$0xff]
                  %207 = vst [vmem:[%s199 + $0x18] sm:$0xff] %v206
                  %v208 = vld [vmem:[%s198 + $0x40] sm:$0xff]
                  %209 = vst [vmem:[%s199 + $0x20] sm:$0xff] %v208
                  %v210 = vld [vmem:[%s198 + $0x50] sm:$0xff]
                  %211 = vst [vmem:[%s199 + $0x28] sm:$0xff] %v210
                $region60: #{cvae_forward.10} parent=54 // loop_footer
                  %s197 = sadd.s32 1, %s193
                $region61: #{cvae_forward.10} parent=54 // loop_footer_branch
                  %192 = sbr.rel target = $region57
                $region62: #{cvae_forward.10} parent=54 // loop_exit
                  _
              $region55: #{cvae_forward.10} parent=39 // pred_fallthru
                _
              // Predicated region
              $region63: #{cvae_forward.10} parent=39 // pred_check
                _
              $region64: #{cvae_forward.10} parent=39 // pred_check_branch
                %213 = sbr.rel target = $region66
              $region65: #{cvae_forward.10} parent=39 // pred_region
                _
              $region66: #{cvae_forward.10} parent=39 // pred_fallthru
                _
            $region40: #{cvae_forward.10} parent=35 // pred_fallthru
              _
            // Predicated region
            $region41: #{cvae_forward.10} parent=35 // pred_check
              _
            $region42: #{cvae_forward.10} parent=35 // pred_check_branch
              %168 = sbr.rel target = $region44
            $region43: #{cvae_forward.10} parent=35 // pred_region
              loop: start=0, step=1, limit=1
              $region45: #{cvae_forward.10} parent=43 // loop_pre_header
                _
              $region46: #{cvae_forward.10} parent=43 // loop_header
                %s171 = sphi 0, %s175
                %p172 = scmp.ge.s32.totalorder %s171, 1
                %s176 = sphi %s162, %s162
                %s177 = sphi %s159, %s159
              $region47: #{cvae_forward.10} parent=43 // loop_header_branch
                %174 = sbr.rel (%p172) target = $region51
              $region48: #{cvae_forward.10} parent=43 // loop_body
                %v178 = vld [vmem:[%s176] sm:$0xff]
                %179 = vst [vmem:[%s177] sm:$0xff] %v178
                %v180 = vld [vmem:[%s176 + $0x10] sm:$0xff]
                %181 = vst [vmem:[%s177 + $0x8] sm:$0xff] %v180
                %v182 = vld [vmem:[%s176 + $0x20] sm:$0xff]
                %183 = vst [vmem:[%s177 + $0x10] sm:$0xff] %v182
                %v184 = vld [vmem:[%s176 + $0x30] sm:$0xff]
                %185 = vst [vmem:[%s177 + $0x18] sm:$0xff] %v184
                %v186 = vld [vmem:[%s176 + $0x40] sm:$0xff]
                %187 = vst [vmem:[%s177 + $0x20] sm:$0xff] %v186
                %v188 = vld [vmem:[%s176 + $0x50] sm:$0xff]
                %189 = vst [vmem:[%s177 + $0x28] sm:$0xff] %v188
              $region49: #{cvae_forward.10} parent=43 // loop_footer
                %s175 = sadd.s32 1, %s171
              $region50: #{cvae_forward.10} parent=43 // loop_footer_branch
                %170 = sbr.rel target = $region46
              $region51: #{cvae_forward.10} parent=43 // loop_exit
                _
            $region44: #{cvae_forward.10} parent=35 // pred_fallthru
              _
          $region36: #{cvae_forward.10} parent=31 // pred_fallthru
            _
          %214 = vnop
        $region32: #{cvae_forward.10} parent=27 // pred_fallthru
          _
      $region28: #{cvae_forward.10} parent=5 // pred_fallthru
        _
      %p215 = scmp.le.s32.totalorder 1, %s10
      %p216 = scmp.lt.s32.totalorder %s10, 3
      %p217 = pnand %p215, %p216
      %p218 = pneg %p217
      // Predicated region
      $region67: #{cvae_forward.10} parent=5 // pred_check
        _
      $region68: #{cvae_forward.10} parent=5 // pred_check_branch
        %220 = sbr.rel (%p217) target = $region70
      $region69: #{cvae_forward.10} parent=5 // pred_region
        %s221 = ssub.s32 %s10, 1
        %s222 = sand.u32 %s44, 1
        %s223 = sand.u32 %s44, 1
        %s224 = smul.addr %s223, 48
        %s225 = scalar_lea.vmem [#allocation2], %s224
        // Predicated region
        $region71: #{cvae_forward.10} parent=69 // pred_check
          %p226 = pneg %p57
        $region72: #{cvae_forward.10} parent=69 // pred_check_branch
          %228 = sbr.rel (%p226) target = $region74
        $region73: #{cvae_forward.10} parent=69 // pred_region
          _
        $region74: #{cvae_forward.10} parent=69 // pred_fallthru
          _
        %p229 = pneg %p31
        %p230 = pneg %p28
        %s231 = sand.u32 %s44, 1
        %s232 = sand.u32 %s44, 1
        %s233 = smul.addr %s232, 48
        %s234 = scalar_lea.vmem [#allocation2], %s233
        %p235 = pneg %p57
        %p236 = pneg %p54
        %p237 = pneg %p78
        %p238 = pneg %p75
        %p239 = pneg %p99
        %p240 = pneg %p96
        %p241 = pneg %p125
        %p242 = pneg %p122
        %s243 = smul.u32 2, %s15
        %p244 = scmp.lt.s32.totalorder %s243, 3
        %s245 = scalar_select %p244, %s243, 3
        %s246 = smul.addr %s245, 8
        %s247 = scalar_lea.vmem %s4, %s246
        %s248 = smul.u32 2, %s15
        %s249 = smul.u32 2, %s15
        %p250 = scmp.lt.s32.totalorder %s249, 3
        %s251 = scalar_select %p250, %s249, 3
        %s252 = smul.addr %s251, 8
        %s253 = scalar_lea.vmem %s4, %s252
        %s254 = smul.u32 2, %s15
        %v256 = vld [vmem:[%s0] sm:$0xf]
        %v257 = vld [vmem:[%s225] sm:$0xff]
        %v258 = vld [vmem:[%s225 + $0x8] sm:$0xff]
        %v259 = vld [vmem:[%s225 + $0x10] sm:$0xff]
        %v260 = vld [vmem:[%s225 + $0x18] sm:$0xff]
        %v261 = vld [vmem:[%s225 + $0x20] sm:$0xff]
        %v262 = vld [vmem:[%s225 + $0x28] sm:$0xff]
        %v269 = vunpack.c.l.b16 %v257
        %v270 = vunpack.c.h.b16 %v257
        %v271 = vunpack.c.l.b16 %v258
        %v272 = vunpack.c.h.b16 %v258
        %v273 = vunpack.c.l.b16 %v259
        %v274 = vunpack.c.h.b16 %v259
        %v275 = vunpack.c.l.b16 %v260
        %v276 = vunpack.c.h.b16 %v260
        %v277 = vunpack.c.l.b16 %v261
        %v278 = vunpack.c.h.b16 %v261
        %v279 = vunpack.c.l.b16 %v262
        %v280 = vunpack.c.h.b16 %v262
        %v281 = vpack.c.b16 %v271, %v269
        %v282 = vpack.c.b16 %v272, %v270
        %v283 = vpack.c.b16 %v275, %v273
        %v284 = vpack.c.b16 %v276, %v274
        %v285 = vpack.c.b16 %v279, %v277
        %v286 = vpack.c.b16 %v280, %v278
        %vm293 = vcmask 392192
        %v295 = vsel %vm293, %v256, 0
        %297 = vmatprep.subr.bf16.mxu0 %v282
        %298 = vmatpush1.bf16.msra.mxu0 %v281
        %299 = vmatprep.subr.bf16.mxu0 %v284
        %300 = vmatpush1.bf16.msra.mxu0 %v283
        %301 = vmatprep.subr.bf16.mxu0 %v286
        %302 = vmatpush1.bf16.msra.mxu0 %v285
        %303 = vmatprep.subr.bf16.mxu0 0
        %304 = vmatpush1.bf16.msra.mxu0 0
        %305 = vmatprep.subr.bf16.mxu0 0
        %306 = vmatpush1.bf16.msra.mxu0 0
        %307 = vmatprep.subr.bf16.mxu0 0
        %308 = vmatpush1.bf16.msra.mxu0 0
        %309 = vmatprep.subr.bf16.mxu0 0
        %310 = vmatpush1.bf16.msra.mxu0 0
        %311 = vmatprep.subr.bf16.mxu0 0
        %312 = vmatpush1.bf16.msra.mxu0 0
        %313 = vmatprep.subr.bf16.mxu0 0
        %314 = vmatpush1.bf16.msra.mxu0 0
        %315 = vmatprep.subr.bf16.mxu0 0
        %316 = vmatpush1.bf16.msra.mxu0 0
        %317 = vmatprep.subr.bf16.mxu0 0
        %318 = vmatpush1.bf16.msra.mxu0 0
        %319 = vmatprep.subr.bf16.mxu0 0
        %320 = vmatpush1.bf16.msra.mxu0 0
        %321 = vmatprep.subr.bf16.mxu0 0
        %322 = vmatpush1.bf16.msra.mxu0 0
        %323 = vmatprep.subr.bf16.mxu0 0
        %324 = vmatpush1.bf16.msra.mxu0 0
        %325 = vmatprep.subr.bf16.mxu0 0
        %326 = vmatpush1.bf16.msra.mxu0 0
        %327 = vmatprep.subr.bf16.mxu0 0
        %328 = vmatpush1.bf16.msra.mxu0 0
        %329 = vmatprep.mubr.bf16.mxu0 0
        %330 = vmatmul.mubr.bf16.gmra.mrb[0].mxu0 %v295
        %v331 = vpop.f32.mrb[0].mxu0
        %v332 = vadd.f32 0.0, %v331
        %v333 = vpop.f32.mrb[0].mxu0
        %v334 = vadd.f32 0.0, %v333
        %v335 = vpop.f32.mrb[0].mxu0
        %v336 = vpop.f32.mrb[0].mxu0
        %337 = vdwg.mxu0
        %v338 = vld [vmem:[%s2] sm:$0xff]
        %340 = vset.pattern.permute.xlu0 0
        %341 = vperm.xlu0 %340, %v338
        %v342 = vpop.permute.xlu0 %341
        %v344 = vmul.f32 %v332, %v342
        %v345 = vmul.f32 %v334, %v342
        %v346 = vld [vmem:[%s3] sm:$0xff]
        %348 = vset.pattern.permute.xlu0 0
        %349 = vperm.xlu0 %348, %v346
        %v350 = vpop.permute.xlu0 %349
        %v352 = vadd.f32 %v344, %v350
        %v353 = vadd.f32 %v345, %v350
        %v354 = vmax.f32 %v352, 0.0
        %v355 = vmax.f32 %v353, 0.0
        %356 = vst [vmem:[%s253] sm:$0xff] %v354
        %357 = vst [vmem:[%s253 + $0x8] sm:$0xff] %v355
        %s358 = smul.u32 2, %s15
        %p359 = scmp.lt.s32.totalorder %s358, 3
        %s360 = scalar_select %p359, %s358, 3
        %s361 = smul.addr %s360, 8
        %s362 = scalar_lea.vmem %s4, %s361
        // Predicated region
        $region75: #{cvae_forward.10} parent=69 // pred_check
          %p363 = pneg %p122
        $region76: #{cvae_forward.10} parent=69 // pred_check_branch
          %365 = sbr.rel (%p363) target = $region78
        $region77: #{cvae_forward.10} parent=69 // pred_region
          %s366 = smul.u32 2, %s15
        $region78: #{cvae_forward.10} parent=69 // pred_fallthru
          _
      $region70: #{cvae_forward.10} parent=5 // pred_fallthru
        _
      %p367 = scmp.le.s32.totalorder 2, %s10
      // Predicated region
      $region79: #{cvae_forward.10} parent=5 // pred_check
        %p368 = pneg %p367
      $region80: #{cvae_forward.10} parent=5 // pred_check_branch
        %370 = sbr.rel (%p368) target = $region82
      $region81: #{cvae_forward.10} parent=5 // pred_region
        %s371 = ssub.s32 %s10, 2
        // Predicated region
        $region83: #{cvae_forward.10} parent=81 // pred_check
          %p372 = pneg %p128
        $region84: #{cvae_forward.10} parent=81 // pred_check_branch
          %374 = sbr.rel (%p372) target = $region86
        $region85: #{cvae_forward.10} parent=81 // pred_region
          %s375 = smul.u32 2, %s16
          %p376 = scmp.lt.s32.totalorder %s375, 3
          %s377 = scalar_select %p376, %s375, 3
          %s378 = smul.addr %s377, 8
          %s379 = scalar_lea.vmem %s4, %s378
        $region86: #{cvae_forward.10} parent=81 // pred_fallthru
          _
      $region82: #{cvae_forward.10} parent=5 // pred_fallthru
        _
    $region6: #{cvae_forward.10} parent=1 // loop_footer
      %s14 = sadd.s32 1, %s10
    $region7: #{cvae_forward.10} parent=1 // loop_footer_branch
      %9 = sbr.rel target = $region3
    $region8: #{cvae_forward.10} parent=1 // loop_exit
      _

// kernel: cvae_forward.11
$region0: #{cvae_forward.11}
  #allocation0 [shape = 'u32[]', space=smem, size = 0x4, offset = 0x4, fixed_abs, tag = 'smem constant byte address 0x4 - core index']
  #allocation1 [shape = 'u32[144,128]{1,0:T(1,128)}', space=vmem, size = 0x12000, scoped, tag = 'internal scratch']
  %s0 = inlined_call_operand.vmem [shape: bf16[8,128], index: 0, kind: input, shape index: {}]
  %s1 = inlined_call_operand.vmem [shape: bf16[128,128], index: 1, kind: input, shape index: {}]
  %s2 = inlined_call_operand.vmem [shape: f32[8,1], index: 2, kind: input, shape index: {}]
  %s3 = inlined_call_operand.vmem [shape: f32[8,1], index: 3, kind: input, shape index: {}]
  %s4 = inlined_call_operand.vmem [shape: f32[8,128], index: 4, kind: output, shape index: {}]
  %s5 = sld [smem:[#allocation0]]
  $region26: #{cvae_forward.11} parent=0
    _
  %s7 = ssub.s32 1, %s5
  %s8 = scalar_select 0, %s7, %s5
  // Predicated region
  $region2: #{cvae_forward.11} parent=0 // pred_check
    _
  $region3: #{cvae_forward.11} parent=0 // pred_check_branch
    %10 = sbr.rel (0) target = $region5
  $region4: #{cvae_forward.11} parent=0 // pred_region
    _
  $region5: #{cvae_forward.11} parent=0 // pred_fallthru
    _
  // Predicated region
  $region6: #{cvae_forward.11} parent=0 // pred_check
    _
  $region7: #{cvae_forward.11} parent=0 // pred_check_branch
    %12 = sbr.rel (0) target = $region9
  $region8: #{cvae_forward.11} parent=0 // pred_region
    _
  $region9: #{cvae_forward.11} parent=0 // pred_fallthru
    _
  // Predicated region
  $region10: #{cvae_forward.11} parent=0 // pred_check
    _
  $region11: #{cvae_forward.11} parent=0 // pred_check_branch
    %14 = sbr.rel (0) target = $region13
  $region12: #{cvae_forward.11} parent=0 // pred_region
    _
  $region13: #{cvae_forward.11} parent=0 // pred_fallthru
    _
  // Predicated region
  $region14: #{cvae_forward.11} parent=0 // pred_check
    _
  $region15: #{cvae_forward.11} parent=0 // pred_check_branch
    %16 = sbr.rel (0) target = $region17
  $region16: #{cvae_forward.11} parent=0 // pred_region
    _
  $region17: #{cvae_forward.11} parent=0 // pred_fallthru
    _
  %v18 = vld [vmem:[%s0] sm:$0xf]
  %v19 = vld [vmem:[%s1] sm:$0xf]
  %v20 = vld [vmem:[%s1 + $0x4] sm:$0xf]
  %v21 = vld [vmem:[%s1 + $0x8] sm:$0xf]
  %v22 = vld [vmem:[%s1 + $0xc] sm:$0xf]
  %v23 = vld [vmem:[%s1 + $0x10] sm:$0xf]
  %v24 = vld [vmem:[%s1 + $0x14] sm:$0xf]
  %v25 = vld [vmem:[%s1 + $0x18] sm:$0xf]
  %v26 = vld [vmem:[%s1 + $0x1c] sm:$0xf]
  %v27 = vld [vmem:[%s1 + $0x20] sm:$0xf]
  %v28 = vld [vmem:[%s1 + $0x24] sm:$0xf]
  %v29 = vld [vmem:[%s1 + $0x28] sm:$0xf]
  %v30 = vld [vmem:[%s1 + $0x2c] sm:$0xf]
  %v31 = vld [vmem:[%s1 + $0x30] sm:$0xf]
  %v32 = vld [vmem:[%s1 + $0x34] sm:$0xf]
  %v33 = vld [vmem:[%s1 + $0x38] sm:$0xf]
  %v34 = vld [vmem:[%s1 + $0x3c] sm:$0xf]
  %v51 = vunpack.c.l.b16 %v19
  %v52 = vunpack.c.l.b16 %v20
  %v53 = vunpack.c.l.b16 %v21
  %v54 = vunpack.c.l.b16 %v22
  %v55 = vunpack.c.l.b16 %v23
  %v56 = vunpack.c.l.b16 %v24
  %v57 = vunpack.c.l.b16 %v25
  %v58 = vunpack.c.l.b16 %v26
  %v59 = vunpack.c.l.b16 %v27
  %v60 = vunpack.c.l.b16 %v28
  %v61 = vunpack.c.l.b16 %v29
  %v62 = vunpack.c.l.b16 %v30
  %v63 = vunpack.c.l.b16 %v31
  %v64 = vunpack.c.l.b16 %v32
  %v65 = vunpack.c.l.b16 %v33
  %v66 = vunpack.c.l.b16 %v34
  %v67 = vpack.c.b16 %v52, %v51
  %v68 = vpack.c.b16 %v54, %v53
  %v69 = vpack.c.b16 %v56, %v55
  %v70 = vpack.c.b16 %v58, %v57
  %v71 = vpack.c.b16 %v60, %v59
  %v72 = vpack.c.b16 %v62, %v61
  %v73 = vpack.c.b16 %v64, %v63
  %v74 = vpack.c.b16 %v66, %v65
  %83 = vmatprep.subr.bf16.mxu0 0
  %84 = vmatpush1.bf16.msra.mxu0 %v67
  %85 = vmatprep.subr.bf16.mxu0 0
  %86 = vmatpush1.bf16.msra.mxu0 %v68
  %87 = vmatprep.subr.bf16.mxu0 0
  %88 = vmatpush1.bf16.msra.mxu0 %v69
  %89 = vmatprep.subr.bf16.mxu0 0
  %90 = vmatpush1.bf16.msra.mxu0 %v70
  %91 = vmatprep.subr.bf16.mxu0 0
  %92 = vmatpush1.bf16.msra.mxu0 %v71
  %93 = vmatprep.subr.bf16.mxu0 0
  %94 = vmatpush1.bf16.msra.mxu0 %v72
  %95 = vmatprep.subr.bf16.mxu0 0
  %96 = vmatpush1.bf16.msra.mxu0 %v73
  %97 = vmatprep.subr.bf16.mxu0 0
  %98 = vmatpush1.bf16.msra.mxu0 %v74
  %99 = vmatprep.subr.bf16.mxu0 0
  %100 = vmatpush1.bf16.msra.mxu0 0
  %101 = vmatprep.subr.bf16.mxu0 0
  %102 = vmatpush1.bf16.msra.mxu0 0
  %103 = vmatprep.subr.bf16.mxu0 0
  %104 = vmatpush1.bf16.msra.mxu0 0
  %105 = vmatprep.subr.bf16.mxu0 0
  %106 = vmatpush1.bf16.msra.mxu0 0
  %107 = vmatprep.subr.bf16.mxu0 0
  %108 = vmatpush1.bf16.msra.mxu0 0
  %109 = vmatprep.subr.bf16.mxu0 0
  %110 = vmatpush1.bf16.msra.mxu0 0
  %111 = vmatprep.subr.bf16.mxu0 0
  %112 = vmatpush1.bf16.msra.mxu0 0
  %113 = vmatprep.subr.bf16.mxu0 0
  %114 = vmatpush1.bf16.msra.mxu0 0
  %115 = vmatprep.mubr.bf16.mxu0 0
  %116 = vmatmul.mubr.bf16.gmra.mrb[0].mxu0 %v18
  %v117 = vpop.f32.mrb[0].mxu0
  %v118 = vadd.f32 0.0, %v117
  %v119 = vpop.f32.mrb[0].mxu0
  %v120 = vpop.f32.mrb[0].mxu0
  %v121 = vpop.f32.mrb[0].mxu0
  %122 = vdwg.mxu0
  %v123 = vld [vmem:[%s2] sm:$0xff]
  %125 = vset.pattern.permute.xlu0 0
  %126 = vperm.xlu0 %125, %v123
  %v127 = vpop.permute.xlu0 %126
  %v129 = vmul.f32 %v118, %v127
  %v130 = vld [vmem:[%s3] sm:$0xff]
  %132 = vset.pattern.permute.xlu0 0
  %133 = vperm.xlu0 %132, %v130
  %v134 = vpop.permute.xlu0 %133
  %v136 = vadd.f32 %v129, %v134
  %v137 = vmax.f32 %v136, 0.0
  %138 = vst [vmem:[%s4] sm:$0xff] %v137
  // Predicated region
  $region18: #{cvae_forward.11} parent=0 // pred_check
    _
  $region19: #{cvae_forward.11} parent=0 // pred_check_branch
    %140 = sbr.rel (0) target = $region21
  $region20: #{cvae_forward.11} parent=0 // pred_region
    _
  $region21: #{cvae_forward.11} parent=0 // pred_fallthru
    _
  // Predicated region
  $region22: #{cvae_forward.11} parent=0 // pred_check
    _
  $region23: #{cvae_forward.11} parent=0 // pred_check_branch
    %142 = sbr.rel (0) target = $region25
  $region24: #{cvae_forward.11} parent=0 // pred_region
    _
  $region25: #{cvae_forward.11} parent=0 // pred_fallthru
    _

// kernel: cvae_forward.12
$region0: #{cvae_forward.12}
  #allocation0 [shape = 'u32[]', space=smem, size = 0x4, offset = 0x4, fixed_abs, tag = 'smem constant byte address 0x4 - core index']
  #allocation1 [shape = 'u32[144,128]{1,0:T(1,128)}', space=vmem, size = 0x12000, scoped, tag = 'internal scratch']
  %s0 = inlined_call_operand.vmem [shape: bf16[8,128], index: 0, kind: input, shape index: {}]
  %s1 = inlined_call_operand.vmem [shape: bf16[128,32], index: 1, kind: input, shape index: {}]
  %s2 = inlined_call_operand.vmem [shape: f32[8,1], index: 2, kind: input, shape index: {}]
  %s3 = inlined_call_operand.vmem [shape: f32[8,1], index: 3, kind: input, shape index: {}]
  %s4 = inlined_call_operand.vmem [shape: f32[8,32], index: 4, kind: output, shape index: {}]
  %s5 = sld [smem:[#allocation0]]
  $region26: #{cvae_forward.12} parent=0
    _
  %s7 = ssub.s32 1, %s5
  %s8 = scalar_select 0, %s7, %s5
  // Predicated region
  $region2: #{cvae_forward.12} parent=0 // pred_check
    _
  $region3: #{cvae_forward.12} parent=0 // pred_check_branch
    %10 = sbr.rel (0) target = $region5
  $region4: #{cvae_forward.12} parent=0 // pred_region
    _
  $region5: #{cvae_forward.12} parent=0 // pred_fallthru
    _
  // Predicated region
  $region6: #{cvae_forward.12} parent=0 // pred_check
    _
  $region7: #{cvae_forward.12} parent=0 // pred_check_branch
    %12 = sbr.rel (0) target = $region9
  $region8: #{cvae_forward.12} parent=0 // pred_region
    _
  $region9: #{cvae_forward.12} parent=0 // pred_fallthru
    _
  // Predicated region
  $region10: #{cvae_forward.12} parent=0 // pred_check
    _
  $region11: #{cvae_forward.12} parent=0 // pred_check_branch
    %14 = sbr.rel (0) target = $region13
  $region12: #{cvae_forward.12} parent=0 // pred_region
    _
  $region13: #{cvae_forward.12} parent=0 // pred_fallthru
    _
  // Predicated region
  $region14: #{cvae_forward.12} parent=0 // pred_check
    _
  $region15: #{cvae_forward.12} parent=0 // pred_check_branch
    %16 = sbr.rel (0) target = $region17
  $region16: #{cvae_forward.12} parent=0 // pred_region
    _
  $region17: #{cvae_forward.12} parent=0 // pred_fallthru
    _
  %v18 = vld [vmem:[%s0] sm:$0xf]
  %v19 = vld [vmem:[%s1] sm:$0xf]
  %v20 = vld [vmem:[%s1 + $0x4] sm:$0xf]
  %v21 = vld [vmem:[%s1 + $0x8] sm:$0xf]
  %v22 = vld [vmem:[%s1 + $0xc] sm:$0xf]
  %v23 = vld [vmem:[%s1 + $0x10] sm:$0xf]
  %v24 = vld [vmem:[%s1 + $0x14] sm:$0xf]
  %v25 = vld [vmem:[%s1 + $0x18] sm:$0xf]
  %v26 = vld [vmem:[%s1 + $0x1c] sm:$0xf]
  %v27 = vld [vmem:[%s1 + $0x20] sm:$0xf]
  %v28 = vld [vmem:[%s1 + $0x24] sm:$0xf]
  %v29 = vld [vmem:[%s1 + $0x28] sm:$0xf]
  %v30 = vld [vmem:[%s1 + $0x2c] sm:$0xf]
  %v31 = vld [vmem:[%s1 + $0x30] sm:$0xf]
  %v32 = vld [vmem:[%s1 + $0x34] sm:$0xf]
  %v33 = vld [vmem:[%s1 + $0x38] sm:$0xf]
  %v34 = vld [vmem:[%s1 + $0x3c] sm:$0xf]
  %v51 = vunpack.c.l.b16 %v19
  %v52 = vunpack.c.l.b16 %v20
  %v53 = vunpack.c.l.b16 %v21
  %v54 = vunpack.c.l.b16 %v22
  %v55 = vunpack.c.l.b16 %v23
  %v56 = vunpack.c.l.b16 %v24
  %v57 = vunpack.c.l.b16 %v25
  %v58 = vunpack.c.l.b16 %v26
  %v59 = vunpack.c.l.b16 %v27
  %v60 = vunpack.c.l.b16 %v28
  %v61 = vunpack.c.l.b16 %v29
  %v62 = vunpack.c.l.b16 %v30
  %v63 = vunpack.c.l.b16 %v31
  %v64 = vunpack.c.l.b16 %v32
  %v65 = vunpack.c.l.b16 %v33
  %v66 = vunpack.c.l.b16 %v34
  %v67 = vpack.c.b16 %v52, %v51
  %v68 = vpack.c.b16 %v54, %v53
  %v69 = vpack.c.b16 %v56, %v55
  %v70 = vpack.c.b16 %v58, %v57
  %v71 = vpack.c.b16 %v60, %v59
  %v72 = vpack.c.b16 %v62, %v61
  %v73 = vpack.c.b16 %v64, %v63
  %v74 = vpack.c.b16 %v66, %v65
  %83 = vmatprep.subr.bf16.mxu0 0
  %84 = vmatpush1.bf16.msra.mxu0 %v67
  %85 = vmatprep.subr.bf16.mxu0 0
  %86 = vmatpush1.bf16.msra.mxu0 %v68
  %87 = vmatprep.subr.bf16.mxu0 0
  %88 = vmatpush1.bf16.msra.mxu0 %v69
  %89 = vmatprep.subr.bf16.mxu0 0
  %90 = vmatpush1.bf16.msra.mxu0 %v70
  %91 = vmatprep.subr.bf16.mxu0 0
  %92 = vmatpush1.bf16.msra.mxu0 %v71
  %93 = vmatprep.subr.bf16.mxu0 0
  %94 = vmatpush1.bf16.msra.mxu0 %v72
  %95 = vmatprep.subr.bf16.mxu0 0
  %96 = vmatpush1.bf16.msra.mxu0 %v73
  %97 = vmatprep.subr.bf16.mxu0 0
  %98 = vmatpush1.bf16.msra.mxu0 %v74
  %99 = vmatprep.subr.bf16.mxu0 0
  %100 = vmatpush1.bf16.msra.mxu0 0
  %101 = vmatprep.subr.bf16.mxu0 0
  %102 = vmatpush1.bf16.msra.mxu0 0
  %103 = vmatprep.subr.bf16.mxu0 0
  %104 = vmatpush1.bf16.msra.mxu0 0
  %105 = vmatprep.subr.bf16.mxu0 0
  %106 = vmatpush1.bf16.msra.mxu0 0
  %107 = vmatprep.subr.bf16.mxu0 0
  %108 = vmatpush1.bf16.msra.mxu0 0
  %109 = vmatprep.subr.bf16.mxu0 0
  %110 = vmatpush1.bf16.msra.mxu0 0
  %111 = vmatprep.subr.bf16.mxu0 0
  %112 = vmatpush1.bf16.msra.mxu0 0
  %113 = vmatprep.subr.bf16.mxu0 0
  %114 = vmatpush1.bf16.msra.mxu0 0
  %115 = vmatprep.mubr.bf16.mxu0 0
  %116 = vmatmul.mubr.bf16.gmra.mrb[0].mxu0 %v18
  %v117 = vpop.f32.mrb[0].mxu0
  %v118 = vadd.f32 0.0, %v117
  %v119 = vpop.f32.mrb[0].mxu0
  %v120 = vpop.f32.mrb[0].mxu0
  %v121 = vpop.f32.mrb[0].mxu0
  %122 = vdwg.mxu0
  %v123 = vld [vmem:[%s2] sm:$0xff]
  %125 = vset.pattern.permute.xlu0 0
  %126 = vperm.xlu0 %125, %v123
  %v127 = vpop.permute.xlu0 %126
  %v129 = vmul.f32 %v118, %v127
  %v130 = vld [vmem:[%s3] sm:$0xff]
  %132 = vset.pattern.permute.xlu0 0
  %133 = vperm.xlu0 %132, %v130
  %v134 = vpop.permute.xlu0 %133
  %v136 = vadd.f32 %v129, %v134
  %v137 = vmax.f32 %v136, 0.0
  %vm138 = vcmask 261120
  %139 = vst.msk [vmem:[%s4] sm:$0xff] %vm138, %v137
  // Predicated region
  $region18: #{cvae_forward.12} parent=0 // pred_check
    _
  $region19: #{cvae_forward.12} parent=0 // pred_check_branch
    %141 = sbr.rel (0) target = $region21
  $region20: #{cvae_forward.12} parent=0 // pred_region
    _
  $region21: #{cvae_forward.12} parent=0 // pred_fallthru
    _
  // Predicated region
  $region22: #{cvae_forward.12} parent=0 // pred_check
    _
  $region23: #{cvae_forward.12} parent=0 // pred_check_branch
    %143 = sbr.rel (0) target = $region25
  $region24: #{cvae_forward.12} parent=0 // pred_region
    _
  $region25: #{cvae_forward.12} parent=0 // pred_fallthru
    _

// kernel: cvae_forward.13
$region0: #{cvae_forward.13}
  #allocation0 [shape = 'u32[]', space=smem, size = 0x4, offset = 0x4, fixed_abs, tag = 'smem constant byte address 0x4 - core index']
  #allocation1 [shape = 'u32[144,128]{1,0:T(1,128)}', space=vmem, size = 0x12000, scoped, tag = 'internal scratch']
  %s0 = inlined_call_operand.vmem [shape: bf16[72,32], index: 0, kind: input, shape index: {}]
  %s1 = inlined_call_operand.vmem [shape: bf16[8,72], index: 1, kind: input, shape index: {}]
  %s2 = inlined_call_operand.vmem [shape: f32[8,1], index: 2, kind: input, shape index: {}]
  %s3 = inlined_call_operand.vmem [shape: f32[8,1], index: 3, kind: input, shape index: {}]
  %s4 = inlined_call_operand.vmem [shape: bf16[8,8], index: 4, kind: input, shape index: {}]
  %s5 = inlined_call_operand.vmem [shape: f32[8,1], index: 5, kind: input, shape index: {}]
  %s6 = inlined_call_operand.vmem [shape: f32[8,32], index: 6, kind: input, shape index: {}]
  %s7 = inlined_call_operand.vmem [shape: f32[8,1], index: 7, kind: input, shape index: {}]
  %s8 = inlined_call_operand.vmem [shape: f32[8,1], index: 8, kind: input, shape index: {}]
  %s9 = inlined_call_operand.vmem [shape: f32[8,32], index: 9, kind: output, shape index: {}]
  %s10 = sld [smem:[#allocation0]]
  $region46: #{cvae_forward.13} parent=0
    _
  %s12 = ssub.s32 1, %s10
  %s13 = scalar_select 0, %s12, %s10
  // Predicated region
  $region2: #{cvae_forward.13} parent=0 // pred_check
    _
  $region3: #{cvae_forward.13} parent=0 // pred_check_branch
    %15 = sbr.rel (0) target = $region5
  $region4: #{cvae_forward.13} parent=0 // pred_region
    _
  $region5: #{cvae_forward.13} parent=0 // pred_fallthru
    _
  // Predicated region
  $region6: #{cvae_forward.13} parent=0 // pred_check
    _
  $region7: #{cvae_forward.13} parent=0 // pred_check_branch
    %17 = sbr.rel (0) target = $region9
  $region8: #{cvae_forward.13} parent=0 // pred_region
    _
  $region9: #{cvae_forward.13} parent=0 // pred_fallthru
    _
  // Predicated region
  $region10: #{cvae_forward.13} parent=0 // pred_check
    _
  $region11: #{cvae_forward.13} parent=0 // pred_check_branch
    %19 = sbr.rel (0) target = $region13
  $region12: #{cvae_forward.13} parent=0 // pred_region
    _
  $region13: #{cvae_forward.13} parent=0 // pred_fallthru
    _
  // Predicated region
  $region14: #{cvae_forward.13} parent=0 // pred_check
    _
  $region15: #{cvae_forward.13} parent=0 // pred_check_branch
    %21 = sbr.rel (0) target = $region17
  $region16: #{cvae_forward.13} parent=0 // pred_region
    _
  $region17: #{cvae_forward.13} parent=0 // pred_fallthru
    _
  // Predicated region
  $region18: #{cvae_forward.13} parent=0 // pred_check
    _
  $region19: #{cvae_forward.13} parent=0 // pred_check_branch
    %23 = sbr.rel (0) target = $region21
  $region20: #{cvae_forward.13} parent=0 // pred_region
    _
  $region21: #{cvae_forward.13} parent=0 // pred_fallthru
    _
  // Predicated region
  $region22: #{cvae_forward.13} parent=0 // pred_check
    _
  $region23: #{cvae_forward.13} parent=0 // pred_check_branch
    %25 = sbr.rel (0) target = $region25
  $region24: #{cvae_forward.13} parent=0 // pred_region
    _
  $region25: #{cvae_forward.13} parent=0 // pred_fallthru
    _
  // Predicated region
  $region26: #{cvae_forward.13} parent=0 // pred_check
    _
  $region27: #{cvae_forward.13} parent=0 // pred_check_branch
    %27 = sbr.rel (0) target = $region29
  $region28: #{cvae_forward.13} parent=0 // pred_region
    _
  $region29: #{cvae_forward.13} parent=0 // pred_fallthru
    _
  // Predicated region
  $region30: #{cvae_forward.13} parent=0 // pred_check
    _
  $region31: #{cvae_forward.13} parent=0 // pred_check_branch
    %29 = sbr.rel (0) target = $region33
  $region32: #{cvae_forward.13} parent=0 // pred_region
    _
  $region33: #{cvae_forward.13} parent=0 // pred_fallthru
    _
  // Predicated region
  $region34: #{cvae_forward.13} parent=0 // pred_check
    _
  $region35: #{cvae_forward.13} parent=0 // pred_check_branch
    %31 = sbr.rel (0) target = $region37
  $region36: #{cvae_forward.13} parent=0 // pred_region
    _
  $region37: #{cvae_forward.13} parent=0 // pred_fallthru
    _
  %v33 = vld [vmem:[%s0] sm:$0xf]
  %v34 = vld [vmem:[%s0 + $0x4] sm:$0xf]
  %v35 = vld [vmem:[%s0 + $0x8] sm:$0xf]
  %v36 = vld [vmem:[%s0 + $0xc] sm:$0xf]
  %v37 = vld [vmem:[%s0 + $0x10] sm:$0xf]
  %v38 = vld [vmem:[%s0 + $0x14] sm:$0xf]
  %v39 = vld [vmem:[%s0 + $0x18] sm:$0xf]
  %v40 = vld [vmem:[%s0 + $0x1c] sm:$0xf]
  %v41 = vld [vmem:[%s0 + $0x20] sm:$0xf]
  %v42 = vmax.bf16 %v33, 0
  %v43 = vmax.bf16 %v34, 0
  %v44 = vmax.bf16 %v35, 0
  %v45 = vmax.bf16 %v36, 0
  %v46 = vmax.bf16 %v37, 0
  %v47 = vmax.bf16 %v38, 0
  %v48 = vmax.bf16 %v39, 0
  %v49 = vmax.bf16 %v40, 0
  %v50 = vmax.bf16 %v41, 0
  %v51 = vld [vmem:[%s1] sm:$0xf]
  %v61 = vunpack.c.l.b16 %v42
  %v62 = vunpack.c.l.b16 %v43
  %v63 = vunpack.c.l.b16 %v44
  %v64 = vunpack.c.l.b16 %v45
  %v65 = vunpack.c.l.b16 %v46
  %v66 = vunpack.c.l.b16 %v47
  %v67 = vunpack.c.l.b16 %v48
  %v68 = vunpack.c.l.b16 %v49
  %v69 = vunpack.c.l.b16 %v50
  %v70 = vpack.c.b16 %v62, %v61
  %v71 = vpack.c.b16 %v64, %v63
  %v72 = vpack.c.b16 %v66, %v65
  %v73 = vpack.c.b16 %v68, %v67
  %v74 = vpack.c.b16 %v69, %v69
  %vm79 = vcmask 588800
  %v81 = vsel %vm79, %v51, 0
  %vm83 = vcmask 1043456
  %v85 = vsel %vm83, %v74, 0
  %87 = vmatprep.subr.bf16.mxu0 0
  %88 = vmatpush1.bf16.msra.mxu0 %v70
  %89 = vmatprep.subr.bf16.mxu0 0
  %90 = vmatpush1.bf16.msra.mxu0 %v71
  %91 = vmatprep.subr.bf16.mxu0 0
  %92 = vmatpush1.bf16.msra.mxu0 %v72
  %93 = vmatprep.subr.bf16.mxu0 0
  %94 = vmatpush1.bf16.msra.mxu0 %v73
  %95 = vmatprep.subr.bf16.mxu0 0
  %96 = vmatpush1.bf16.msra.mxu0 %v85
  %97 = vmatprep.subr.bf16.mxu0 0
  %98 = vmatpush1.bf16.msra.mxu0 0
  %99 = vmatprep.subr.bf16.mxu0 0
  %100 = vmatpush1.bf16.msra.mxu0 0
  %101 = vmatprep.subr.bf16.mxu0 0
  %102 = vmatpush1.bf16.msra.mxu0 0
  %103 = vmatprep.subr.bf16.mxu0 0
  %104 = vmatpush1.bf16.msra.mxu0 0
  %105 = vmatprep.subr.bf16.mxu0 0
  %106 = vmatpush1.bf16.msra.mxu0 0
  %107 = vmatprep.subr.bf16.mxu0 0
  %108 = vmatpush1.bf16.msra.mxu0 0
  %109 = vmatprep.subr.bf16.mxu0 0
  %110 = vmatpush1.bf16.msra.mxu0 0
  %111 = vmatprep.subr.bf16.mxu0 0
  %112 = vmatpush1.bf16.msra.mxu0 0
  %113 = vmatprep.subr.bf16.mxu0 0
  %114 = vmatpush1.bf16.msra.mxu0 0
  %115 = vmatprep.subr.bf16.mxu0 0
  %116 = vmatpush1.bf16.msra.mxu0 0
  %117 = vmatprep.subr.bf16.mxu0 0
  %118 = vmatpush1.bf16.msra.mxu0 0
  %119 = vmatprep.mubr.bf16.mxu0 0
  %120 = vmatmul.mubr.bf16.gmra.mrb[0].mxu0 %v81
  %v121 = vpop.f32.mrb[0].mxu0
  %v122 = vadd.f32 0.0, %v121
  %v123 = vpop.f32.mrb[0].mxu0
  %v124 = vpop.f32.mrb[0].mxu0
  %v125 = vpop.f32.mrb[0].mxu0
  %126 = vdwg.mxu0
  %v127 = vld [vmem:[%s2] sm:$0xff]
  %129 = vset.pattern.permute.xlu0 0
  %130 = vperm.xlu0 %129, %v127
  %v131 = vpop.permute.xlu0 %130
  %v133 = vmul.f32 %v122, %v131
  %v134 = vld [vmem:[%s3] sm:$0xff]
  %136 = vset.pattern.permute.xlu0 0
  %137 = vperm.xlu0 %136, %v134
  %v138 = vpop.permute.xlu0 %137
  %v140 = vadd.f32 %v133, %v138
  %v141 = vmax.f32 %v140, 0.0
  %v142 = vld [vmem:[%s4] sm:$0xf]
  %v143 = vpack.c.bf16 %v141, %v141
  %v144 = vld [vmem:[%s5] sm:$0xff]
  %146 = vset.pattern.permute.xlu0 0
  %147 = vperm.xlu0 %146, %v144
  %v148 = vpop.permute.xlu0 %147
  %vm150 = vcmask 64512
  %v152 = vsel %vm150, %v142, 0
  %v155 = vsel %vm83, %v143, 0
  %157 = vmatprep.subr.bf16.mxu0 0
  %158 = vmatpush1.bf16.msra.mxu0 %v155
  %159 = vmatprep.subr.bf16.mxu0 0
  %160 = vmatpush1.bf16.msra.mxu0 0
  %161 = vmatprep.subr.bf16.mxu0 0
  %162 = vmatpush1.bf16.msra.mxu0 0
  %163 = vmatprep.subr.bf16.mxu0 0
  %164 = vmatpush1.bf16.msra.mxu0 0
  %165 = vmatprep.subr.bf16.mxu0 0
  %166 = vmatpush1.bf16.msra.mxu0 0
  %167 = vmatprep.subr.bf16.mxu0 0
  %168 = vmatpush1.bf16.msra.mxu0 0
  %169 = vmatprep.subr.bf16.mxu0 0
  %170 = vmatpush1.bf16.msra.mxu0 0
  %171 = vmatprep.subr.bf16.mxu0 0
  %172 = vmatpush1.bf16.msra.mxu0 0
  %173 = vmatprep.subr.bf16.mxu0 0
  %174 = vmatpush1.bf16.msra.mxu0 0
  %175 = vmatprep.subr.bf16.mxu0 0
  %176 = vmatpush1.bf16.msra.mxu0 0
  %177 = vmatprep.subr.bf16.mxu0 0
  %178 = vmatpush1.bf16.msra.mxu0 0
  %179 = vmatprep.subr.bf16.mxu0 0
  %180 = vmatpush1.bf16.msra.mxu0 0
  %181 = vmatprep.subr.bf16.mxu0 0
  %182 = vmatpush1.bf16.msra.mxu0 0
  %183 = vmatprep.subr.bf16.mxu0 0
  %184 = vmatpush1.bf16.msra.mxu0 0
  %185 = vmatprep.subr.bf16.mxu0 0
  %186 = vmatpush1.bf16.msra.mxu0 0
  %187 = vmatprep.subr.bf16.mxu0 0
  %188 = vmatpush1.bf16.msra.mxu0 0
  %189 = vmatprep.mubr.bf16.mxu0 0
  %190 = vmatmul.mubr.bf16.gmra.mrb[0].mxu0 %v152
  %v191 = vpop.f32.mrb[0].mxu0
  %v192 = vadd.f32 %v148, %v191
  %v193 = vpop.f32.mrb[0].mxu0
  %v194 = vpop.f32.mrb[0].mxu0
  %v195 = vpop.f32.mrb[0].mxu0
  %196 = vdwg.mxu0
  %v197 = vld [vmem:[%s6] sm:$0xff]
  %v198 = vadd.f32 %v197, %v192
  %v199 = vld [vmem:[%s7] sm:$0xff]
  %201 = vset.pattern.permute.xlu0 0
  %202 = vperm.xlu0 %201, %v199
  %v203 = vpop.permute.xlu0 %202
  %v205 = vmul.f32 %v198, %v203
  %v206 = vld [vmem:[%s8] sm:$0xff]
  %208 = vset.pattern.permute.xlu0 0
  %209 = vperm.xlu0 %208, %v206
  %v210 = vpop.permute.xlu0 %209
  %v212 = vadd.f32 %v205, %v210
  %vm213 = vcmask 261120
  %214 = vst.msk [vmem:[%s9] sm:$0xff] %vm213, %v212
  // Predicated region
  $region38: #{cvae_forward.13} parent=0 // pred_check
    _
  $region39: #{cvae_forward.13} parent=0 // pred_check_branch
    %216 = sbr.rel (0) target = $region41
  $region40: #{cvae_forward.13} parent=0 // pred_region
    _
  $region41: #{cvae_forward.13} parent=0 // pred_fallthru
    _
  // Predicated region
  $region42: #{cvae_forward.13} parent=0 // pred_check
    _
  $region43: #{cvae_forward.13} parent=0 // pred_check_branch
    %218 = sbr.rel (0) target = $region45
  $region44: #{cvae_forward.13} parent=0 // pred_region
    _
  $region45: #{cvae_forward.13} parent=0 // pred_fallthru
    _

// kernel: cvae_forward.17
$region0: #{cvae_forward.17}
  #allocation0 [shape = 'u32[]', space=smem, size = 0x4, offset = 0x4, fixed_abs, tag = 'smem constant byte address 0x4 - core index']
  #allocation1 [shape = 'u32[144,128]{1,0:T(1,128)}', space=vmem, size = 0x12000, scoped, tag = 'internal scratch']
  %s0 = inlined_call_operand.vmem [shape: bf16[32,72], index: 0, kind: input, shape index: {}]
  %s1 = inlined_call_operand.vmem [shape: bf16[72,32], index: 1, kind: input, shape index: {}]
  %s2 = inlined_call_operand.vmem [shape: f32[32,1], index: 2, kind: input, shape index: {}]
  %s3 = inlined_call_operand.vmem [shape: f32[32,1], index: 3, kind: input, shape index: {}]
  %s4 = inlined_call_operand.vmem [shape: f32[32,32], index: 4, kind: output, shape index: {}]
  %s5 = sld [smem:[#allocation0]]
  $region26: #{cvae_forward.17} parent=0
    _
  %s7 = ssub.s32 1, %s5
  %s8 = scalar_select 0, %s7, %s5
  // Predicated region
  $region2: #{cvae_forward.17} parent=0 // pred_check
    _
  $region3: #{cvae_forward.17} parent=0 // pred_check_branch
    %10 = sbr.rel (0) target = $region5
  $region4: #{cvae_forward.17} parent=0 // pred_region
    _
  $region5: #{cvae_forward.17} parent=0 // pred_fallthru
    _
  // Predicated region
  $region6: #{cvae_forward.17} parent=0 // pred_check
    _
  $region7: #{cvae_forward.17} parent=0 // pred_check_branch
    %12 = sbr.rel (0) target = $region9
  $region8: #{cvae_forward.17} parent=0 // pred_region
    _
  $region9: #{cvae_forward.17} parent=0 // pred_fallthru
    _
  // Predicated region
  $region10: #{cvae_forward.17} parent=0 // pred_check
    _
  $region11: #{cvae_forward.17} parent=0 // pred_check_branch
    %14 = sbr.rel (0) target = $region13
  $region12: #{cvae_forward.17} parent=0 // pred_region
    _
  $region13: #{cvae_forward.17} parent=0 // pred_fallthru
    _
  // Predicated region
  $region14: #{cvae_forward.17} parent=0 // pred_check
    _
  $region15: #{cvae_forward.17} parent=0 // pred_check_branch
    %16 = sbr.rel (0) target = $region17
  $region16: #{cvae_forward.17} parent=0 // pred_region
    _
  $region17: #{cvae_forward.17} parent=0 // pred_fallthru
    _
  %v18 = vld [vmem:[%s0] sm:$0xf]
  %v19 = vld [vmem:[%s0 + $0x4] sm:$0xf]
  %v20 = vld [vmem:[%s0 + $0x8] sm:$0xf]
  %v21 = vld [vmem:[%s0 + $0xc] sm:$0xf]
  %v22 = vld [vmem:[%s1] sm:$0xf]
  %v23 = vld [vmem:[%s1 + $0x4] sm:$0xf]
  %v24 = vld [vmem:[%s1 + $0x8] sm:$0xf]
  %v25 = vld [vmem:[%s1 + $0xc] sm:$0xf]
  %v26 = vld [vmem:[%s1 + $0x10] sm:$0xf]
  %v27 = vld [vmem:[%s1 + $0x14] sm:$0xf]
  %v28 = vld [vmem:[%s1 + $0x18] sm:$0xf]
  %v29 = vld [vmem:[%s1 + $0x1c] sm:$0xf]
  %v30 = vld [vmem:[%s1 + $0x20] sm:$0xf]
  %v35 = vunpack.c.l.b16 %v18
  %v36 = vunpack.c.l.b16 %v19
  %v37 = vunpack.c.l.b16 %v20
  %v38 = vunpack.c.l.b16 %v21
  %v39 = vpack.c.b16 %v36, %v35
  %v40 = vpack.c.b16 %v38, %v37
  %v50 = vunpack.c.l.b16 %v22
  %v51 = vunpack.c.l.b16 %v23
  %v52 = vunpack.c.l.b16 %v24
  %v53 = vunpack.c.l.b16 %v25
  %v54 = vunpack.c.l.b16 %v26
  %v55 = vunpack.c.l.b16 %v27
  %v56 = vunpack.c.l.b16 %v28
  %v57 = vunpack.c.l.b16 %v29
  %v58 = vunpack.c.l.b16 %v30
  %v59 = vpack.c.b16 %v51, %v50
  %v60 = vpack.c.b16 %v53, %v52
  %v61 = vpack.c.b16 %v55, %v54
  %v62 = vpack.c.b16 %v57, %v56
  %v63 = vpack.c.b16 %v58, %v58
  %vm68 = vcmask 588800
  %v70 = vsel %vm68, %v39, 0
  %v73 = vsel %vm68, %v40, 0
  %vm75 = vcmask 1043456
  %v77 = vsel %vm75, %v63, 0
  %79 = vmatprep.subr.bf16.mxu0 0
  %80 = vmatpush1.bf16.msra.mxu0 %v59
  %81 = vmatprep.subr.bf16.mxu0 0
  %82 = vmatpush1.bf16.msra.mxu0 %v60
  %83 = vmatprep.subr.bf16.mxu0 0
  %84 = vmatpush1.bf16.msra.mxu0 %v61
  %85 = vmatprep.subr.bf16.mxu0 0
  %86 = vmatpush1.bf16.msra.mxu0 %v62
  %87 = vmatprep.subr.bf16.mxu0 0
  %88 = vmatpush1.bf16.msra.mxu0 %v77
  %89 = vmatprep.subr.bf16.mxu0 0
  %90 = vmatpush1.bf16.msra.mxu0 0
  %91 = vmatprep.subr.bf16.mxu0 0
  %92 = vmatpush1.bf16.msra.mxu0 0
  %93 = vmatprep.subr.bf16.mxu0 0
  %94 = vmatpush1.bf16.msra.mxu0 0
  %95 = vmatprep.subr.bf16.mxu0 0
  %96 = vmatpush1.bf16.msra.mxu0 0
  %97 = vmatprep.subr.bf16.mxu0 0
  %98 = vmatpush1.bf16.msra.mxu0 0
  %99 = vmatprep.subr.bf16.mxu0 0
  %100 = vmatpush1.bf16.msra.mxu0 0
  %101 = vmatprep.subr.bf16.mxu0 0
  %102 = vmatpush1.bf16.msra.mxu0 0
  %103 = vmatprep.subr.bf16.mxu0 0
  %104 = vmatpush1.bf16.msra.mxu0 0
  %105 = vmatprep.subr.bf16.mxu0 0
  %106 = vmatpush1.bf16.msra.mxu0 0
  %107 = vmatprep.subr.bf16.mxu0 0
  %108 = vmatpush1.bf16.msra.mxu0 0
  %109 = vmatprep.subr.bf16.mxu0 0
  %110 = vmatpush1.bf16.msra.mxu0 0
  %111 = vmatprep.mubr.bf16.mxu0 0
  %112 = vmatmul.mubr.bf16.gmra.mrb[0].mxu0 %v70
  %v113 = vpop.f32.mrb[0].mxu0
  %v114 = vadd.f32 0.0, %v113
  %v115 = vpop.f32.mrb[0].mxu0
  %v116 = vpop.f32.mrb[0].mxu0
  %v117 = vadd.f32 0.0, %v116
  %v118 = vpop.f32.mrb[0].mxu0
  %119 = vmatprep.mubr.bf16.mxu0 0
  %120 = vmatmul.mubr.bf16.gmra.mrb[0].mxu0 %v73
  %v121 = vpop.f32.mrb[0].mxu0
  %v122 = vadd.f32 0.0, %v121
  %v123 = vpop.f32.mrb[0].mxu0
  %v124 = vpop.f32.mrb[0].mxu0
  %v125 = vadd.f32 0.0, %v124
  %v126 = vpop.f32.mrb[0].mxu0
  %127 = vdwg.mxu0
  %v128 = vld [vmem:[%s2] sm:$0xff]
  %v129 = vld [vmem:[%s2 + $0x8] sm:$0xff]
  %v130 = vld [vmem:[%s2 + $0x10] sm:$0xff]
  %v131 = vld [vmem:[%s2 + $0x18] sm:$0xff]
  %133 = vset.pattern.permute.xlu0 0
  %134 = vperm.xlu0 %133, %v128
  %v135 = vpop.permute.xlu0 %134
  %138 = vset.pattern.permute.xlu0 0
  %139 = vperm.xlu0 %138, %v129
  %v140 = vpop.permute.xlu0 %139
  %143 = vset.pattern.permute.xlu0 0
  %144 = vperm.xlu0 %143, %v130
  %v145 = vpop.permute.xlu0 %144
  %148 = vset.pattern.permute.xlu0 0
  %149 = vperm.xlu0 %148, %v131
  %v150 = vpop.permute.xlu0 %149
  %v152 = vmul.f32 %v114, %v135
  %v153 = vmul.f32 %v117, %v140
  %v154 = vmul.f32 %v122, %v145
  %v155 = vmul.f32 %v125, %v150
  %v156 = vld [vmem:[%s3] sm:$0xff]
  %v157 = vld [vmem:[%s3 + $0x8] sm:$0xff]
  %v158 = vld [vmem:[%s3 + $0x10] sm:$0xff]
  %v159 = vld [vmem:[%s3 + $0x18] sm:$0xff]
  %161 = vset.pattern.permute.xlu0 0
  %162 = vperm.xlu0 %161, %v156
  %v163 = vpop.permute.xlu0 %162
  %166 = vset.pattern.permute.xlu0 0
  %167 = vperm.xlu0 %166, %v157
  %v168 = vpop.permute.xlu0 %167
  %171 = vset.pattern.permute.xlu0 0
  %172 = vperm.xlu0 %171, %v158
  %v173 = vpop.permute.xlu0 %172
  %176 = vset.pattern.permute.xlu0 0
  %177 = vperm.xlu0 %176, %v159
  %v178 = vpop.permute.xlu0 %177
  %v180 = vadd.f32 %v152, %v163
  %v181 = vadd.f32 %v153, %v168
  %v182 = vadd.f32 %v154, %v173
  %v183 = vadd.f32 %v155, %v178
  %v184 = vmax.f32 %v180, 0.0
  %v185 = vmax.f32 %v181, 0.0
  %v186 = vmax.f32 %v182, 0.0
  %v187 = vmax.f32 %v183, 0.0
  %vm188 = vcmask 261120
  %189 = vst.msk [vmem:[%s4] sm:$0xff] %vm188, %v184
  %190 = vst.msk [vmem:[%s4 + $0x8] sm:$0xff] %vm188, %v185
  %191 = vst.msk [vmem:[%s4 + $0x10] sm:$0xff] %vm188, %v186
  %192 = vst.msk [vmem:[%s4 + $0x18] sm:$0xff] %vm188, %v187
  // Predicated region
  $region18: #{cvae_forward.17} parent=0 // pred_check
    _
  $region19: #{cvae_forward.17} parent=0 // pred_check_branch
    %194 = sbr.rel (0) target = $region21
  $region20: #{cvae_forward.17} parent=0 // pred_region
    _
  $region21: #{cvae_forward.17} parent=0 // pred_fallthru
    _
  // Predicated region
  $region22: #{cvae_forward.17} parent=0 // pred_check
    _
  $region23: #{cvae_forward.17} parent=0 // pred_check_branch
    %196 = sbr.rel (0) target = $region25
  $region24: #{cvae_forward.17} parent=0 // pred_region
    _
  $region25: #{cvae_forward.17} parent=0 // pred_fallthru
    _

// kernel: cvae_forward.18
$region0: #{cvae_forward.18}
  #allocation0 [shape = 'u32[]', space=smem, size = 0x4, offset = 0x4, fixed_abs, tag = 'smem constant byte address 0x4 - core index']
  #allocation1 [shape = 'u32[144,128]{1,0:T(1,128)}', space=vmem, size = 0x12000, scoped, tag = 'internal scratch']
  %s0 = inlined_call_operand.vmem [shape: bf16[32,72], index: 0, kind: input, shape index: {}]
  %s1 = inlined_call_operand.vmem [shape: bf16[72,128], index: 1, kind: input, shape index: {}]
  %s2 = inlined_call_operand.vmem [shape: f32[32,1], index: 2, kind: input, shape index: {}]
  %s3 = inlined_call_operand.vmem [shape: f32[32,1], index: 3, kind: input, shape index: {}]
  %s4 = inlined_call_operand.vmem [shape: f32[32,128], index: 4, kind: output, shape index: {}]
  %s5 = sld [smem:[#allocation0]]
  $region26: #{cvae_forward.18} parent=0
    _
  %s7 = ssub.s32 1, %s5
  %s8 = scalar_select 0, %s7, %s5
  // Predicated region
  $region2: #{cvae_forward.18} parent=0 // pred_check
    _
  $region3: #{cvae_forward.18} parent=0 // pred_check_branch
    %10 = sbr.rel (0) target = $region5
  $region4: #{cvae_forward.18} parent=0 // pred_region
    _
  $region5: #{cvae_forward.18} parent=0 // pred_fallthru
    _
  // Predicated region
  $region6: #{cvae_forward.18} parent=0 // pred_check
    _
  $region7: #{cvae_forward.18} parent=0 // pred_check_branch
    %12 = sbr.rel (0) target = $region9
  $region8: #{cvae_forward.18} parent=0 // pred_region
    _
  $region9: #{cvae_forward.18} parent=0 // pred_fallthru
    _
  // Predicated region
  $region10: #{cvae_forward.18} parent=0 // pred_check
    _
  $region11: #{cvae_forward.18} parent=0 // pred_check_branch
    %14 = sbr.rel (0) target = $region13
  $region12: #{cvae_forward.18} parent=0 // pred_region
    _
  $region13: #{cvae_forward.18} parent=0 // pred_fallthru
    _
  // Predicated region
  $region14: #{cvae_forward.18} parent=0 // pred_check
    _
  $region15: #{cvae_forward.18} parent=0 // pred_check_branch
    %16 = sbr.rel (0) target = $region17
  $region16: #{cvae_forward.18} parent=0 // pred_region
    _
  $region17: #{cvae_forward.18} parent=0 // pred_fallthru
    _
  %v18 = vld [vmem:[%s0] sm:$0xf]
  %v19 = vld [vmem:[%s0 + $0x4] sm:$0xf]
  %v20 = vld [vmem:[%s0 + $0x8] sm:$0xf]
  %v21 = vld [vmem:[%s0 + $0xc] sm:$0xf]
  %v22 = vld [vmem:[%s1] sm:$0xf]
  %v23 = vld [vmem:[%s1 + $0x4] sm:$0xf]
  %v24 = vld [vmem:[%s1 + $0x8] sm:$0xf]
  %v25 = vld [vmem:[%s1 + $0xc] sm:$0xf]
  %v26 = vld [vmem:[%s1 + $0x10] sm:$0xf]
  %v27 = vld [vmem:[%s1 + $0x14] sm:$0xf]
  %v28 = vld [vmem:[%s1 + $0x18] sm:$0xf]
  %v29 = vld [vmem:[%s1 + $0x1c] sm:$0xf]
  %v30 = vld [vmem:[%s1 + $0x20] sm:$0xf]
  %v35 = vunpack.c.l.b16 %v18
  %v36 = vunpack.c.l.b16 %v19
  %v37 = vunpack.c.l.b16 %v20
  %v38 = vunpack.c.l.b16 %v21
  %v39 = vpack.c.b16 %v36, %v35
  %v40 = vpack.c.b16 %v38, %v37
  %v50 = vunpack.c.l.b16 %v22
  %v51 = vunpack.c.l.b16 %v23
  %v52 = vunpack.c.l.b16 %v24
  %v53 = vunpack.c.l.b16 %v25
  %v54 = vunpack.c.l.b16 %v26
  %v55 = vunpack.c.l.b16 %v27
  %v56 = vunpack.c.l.b16 %v28
  %v57 = vunpack.c.l.b16 %v29
  %v58 = vunpack.c.l.b16 %v30
  %v59 = vpack.c.b16 %v51, %v50
  %v60 = vpack.c.b16 %v53, %v52
  %v61 = vpack.c.b16 %v55, %v54
  %v62 = vpack.c.b16 %v57, %v56
  %v63 = vpack.c.b16 %v58, %v58
  %vm68 = vcmask 588800
  %v70 = vsel %vm68, %v39, 0
  %v73 = vsel %vm68, %v40, 0
  %vm75 = vcmask 1043456
  %v77 = vsel %vm75, %v63, 0
  %79 = vmatprep.subr.bf16.mxu0 0
  %80 = vmatpush1.bf16.msra.mxu0 %v59
  %81 = vmatprep.subr.bf16.mxu0 0
  %82 = vmatpush1.bf16.msra.mxu0 %v60
  %83 = vmatprep.subr.bf16.mxu0 0
  %84 = vmatpush1.bf16.msra.mxu0 %v61
  %85 = vmatprep.subr.bf16.mxu0 0
  %86 = vmatpush1.bf16.msra.mxu0 %v62
  %87 = vmatprep.subr.bf16.mxu0 0
  %88 = vmatpush1.bf16.msra.mxu0 %v77
  %89 = vmatprep.subr.bf16.mxu0 0
  %90 = vmatpush1.bf16.msra.mxu0 0
  %91 = vmatprep.subr.bf16.mxu0 0
  %92 = vmatpush1.bf16.msra.mxu0 0
  %93 = vmatprep.subr.bf16.mxu0 0
  %94 = vmatpush1.bf16.msra.mxu0 0
  %95 = vmatprep.subr.bf16.mxu0 0
  %96 = vmatpush1.bf16.msra.mxu0 0
  %97 = vmatprep.subr.bf16.mxu0 0
  %98 = vmatpush1.bf16.msra.mxu0 0
  %99 = vmatprep.subr.bf16.mxu0 0
  %100 = vmatpush1.bf16.msra.mxu0 0
  %101 = vmatprep.subr.bf16.mxu0 0
  %102 = vmatpush1.bf16.msra.mxu0 0
  %103 = vmatprep.subr.bf16.mxu0 0
  %104 = vmatpush1.bf16.msra.mxu0 0
  %105 = vmatprep.subr.bf16.mxu0 0
  %106 = vmatpush1.bf16.msra.mxu0 0
  %107 = vmatprep.subr.bf16.mxu0 0
  %108 = vmatpush1.bf16.msra.mxu0 0
  %109 = vmatprep.subr.bf16.mxu0 0
  %110 = vmatpush1.bf16.msra.mxu0 0
  %111 = vmatprep.mubr.bf16.mxu0 0
  %112 = vmatmul.mubr.bf16.gmra.mrb[0].mxu0 %v70
  %v113 = vpop.f32.mrb[0].mxu0
  %v114 = vadd.f32 0.0, %v113
  %v115 = vpop.f32.mrb[0].mxu0
  %v116 = vpop.f32.mrb[0].mxu0
  %v117 = vadd.f32 0.0, %v116
  %v118 = vpop.f32.mrb[0].mxu0
  %119 = vmatprep.mubr.bf16.mxu0 0
  %120 = vmatmul.mubr.bf16.gmra.mrb[0].mxu0 %v73
  %v121 = vpop.f32.mrb[0].mxu0
  %v122 = vadd.f32 0.0, %v121
  %v123 = vpop.f32.mrb[0].mxu0
  %v124 = vpop.f32.mrb[0].mxu0
  %v125 = vadd.f32 0.0, %v124
  %v126 = vpop.f32.mrb[0].mxu0
  %127 = vdwg.mxu0
  %v128 = vld [vmem:[%s2] sm:$0xff]
  %v129 = vld [vmem:[%s2 + $0x8] sm:$0xff]
  %v130 = vld [vmem:[%s2 + $0x10] sm:$0xff]
  %v131 = vld [vmem:[%s2 + $0x18] sm:$0xff]
  %133 = vset.pattern.permute.xlu0 0
  %134 = vperm.xlu0 %133, %v128
  %v135 = vpop.permute.xlu0 %134
  %138 = vset.pattern.permute.xlu0 0
  %139 = vperm.xlu0 %138, %v129
  %v140 = vpop.permute.xlu0 %139
  %143 = vset.pattern.permute.xlu0 0
  %144 = vperm.xlu0 %143, %v130
  %v145 = vpop.permute.xlu0 %144
  %148 = vset.pattern.permute.xlu0 0
  %149 = vperm.xlu0 %148, %v131
  %v150 = vpop.permute.xlu0 %149
  %v152 = vmul.f32 %v114, %v135
  %v153 = vmul.f32 %v117, %v140
  %v154 = vmul.f32 %v122, %v145
  %v155 = vmul.f32 %v125, %v150
  %v156 = vld [vmem:[%s3] sm:$0xff]
  %v157 = vld [vmem:[%s3 + $0x8] sm:$0xff]
  %v158 = vld [vmem:[%s3 + $0x10] sm:$0xff]
  %v159 = vld [vmem:[%s3 + $0x18] sm:$0xff]
  %161 = vset.pattern.permute.xlu0 0
  %162 = vperm.xlu0 %161, %v156
  %v163 = vpop.permute.xlu0 %162
  %166 = vset.pattern.permute.xlu0 0
  %167 = vperm.xlu0 %166, %v157
  %v168 = vpop.permute.xlu0 %167
  %171 = vset.pattern.permute.xlu0 0
  %172 = vperm.xlu0 %171, %v158
  %v173 = vpop.permute.xlu0 %172
  %176 = vset.pattern.permute.xlu0 0
  %177 = vperm.xlu0 %176, %v159
  %v178 = vpop.permute.xlu0 %177
  %v180 = vadd.f32 %v152, %v163
  %v181 = vadd.f32 %v153, %v168
  %v182 = vadd.f32 %v154, %v173
  %v183 = vadd.f32 %v155, %v178
  %v184 = vmax.f32 %v180, 0.0
  %v185 = vmax.f32 %v181, 0.0
  %v186 = vmax.f32 %v182, 0.0
  %v187 = vmax.f32 %v183, 0.0
  %188 = vst [vmem:[%s4] sm:$0xff] %v184
  %189 = vst [vmem:[%s4 + $0x8] sm:$0xff] %v185
  %190 = vst [vmem:[%s4 + $0x10] sm:$0xff] %v186
  %191 = vst [vmem:[%s4 + $0x18] sm:$0xff] %v187
  // Predicated region
  $region18: #{cvae_forward.18} parent=0 // pred_check
    _
  $region19: #{cvae_forward.18} parent=0 // pred_check_branch
    %193 = sbr.rel (0) target = $region21
  $region20: #{cvae_forward.18} parent=0 // pred_region
    _
  $region21: #{cvae_forward.18} parent=0 // pred_fallthru
    _
  // Predicated region
  $region22: #{cvae_forward.18} parent=0 // pred_check
    _
  $region23: #{cvae_forward.18} parent=0 // pred_check_branch
    %195 = sbr.rel (0) target = $region25
  $region24: #{cvae_forward.18} parent=0 // pred_region
    _
  $region25: #{cvae_forward.18} parent=0 // pred_fallthru
    _

// kernel: cvae_forward.19
$region0: #{cvae_forward.19}
  #allocation0 [shape = 'u32[]', space=smem, size = 0x4, offset = 0x4, fixed_abs, tag = 'smem constant byte address 0x4 - core index']
  #allocation1 [shape = 'u32[144,128]{1,0:T(1,128)}', space=vmem, size = 0x12000, scoped, tag = 'internal scratch']
  %s0 = inlined_call_operand.vmem [shape: bf16[12,72], index: 0, kind: input, shape index: {}]
  %s1 = inlined_call_operand.vmem [shape: bf16[72,512], index: 1, kind: input, shape index: {}]
  %s2 = inlined_call_operand.vmem [shape: f32[12,1], index: 2, kind: input, shape index: {}]
  %s3 = inlined_call_operand.vmem [shape: f32[12,1], index: 3, kind: input, shape index: {}]
  %s4 = inlined_call_operand.vmem [shape: f32[12,512], index: 4, kind: output, shape index: {}]
  %s5 = sld [smem:[#allocation0]]
  $region106: #{cvae_forward.19} parent=0
    _
  %s7 = ssub.s32 1, %s5
  %s8 = scalar_select 0, %s7, %s5
  $region1: #{cvae_forward.19} parent=0
    #allocation2 [shape = 'u8[73728]{0}', space=vmem, size = 0x12000, scoped, tag = 'input window, operand 1']
    #allocation3 [shape = 'u8[32768]{0}', space=vmem, size = 0x8000, scoped, tag = 'output window, operand 0']
    loop: start=0, step=1, limit=4
    $region2: #{cvae_forward.19} parent=1 // loop_pre_header
      _
    $region3: #{cvae_forward.19} parent=1 // loop_header
      %s10 = sphi 0, %s14
      %p11 = scmp.ge.s32.totalorder %s10, 4
      %s18 = sphi 0, %s18
      %s20 = sphi 0, %s18
      %s21 = sphi 0, %s20
      %s35 = sphi 0, %s21
      %s41 = sphi 0, %s43
      %s44 = sphi 0, %s41
      %s45 = sphi 0, %s44
      %s61 = sphi 0, %s45
      %s65 = sphi 0, %s65
      %s67 = sphi 0, %s65
      %s68 = sphi 0, %s67
      %s82 = sphi 0, %s68
      %s86 = sphi 0, %s86
      %s88 = sphi 0, %s86
      %s89 = sphi 0, %s88
      %s103 = sphi 0, %s89
      %s109 = sphi 0, %s111
      %s112 = sphi 0, %s109
      %s113 = sphi 0, %s112
      %s129 = sphi 0, %s113
    $region4: #{cvae_forward.19} parent=1 // loop_header_branch
      %13 = sbr.rel (%p11) target = $region8
    $region5: #{cvae_forward.19} parent=1 // loop_body
      %s15 = ssub.s32 %s10, 1
      %s16 = ssub.s32 %s10, 2
      %s17 = sadd.s32 %s10, 1
      %s19 = sadd.s32 %s18, 1
      %p22 = scmp.eq.s32.totalorder %s10, 1
      %p23 = scmp.ne.s32.totalorder %s18, %s20
      %p24 = scmp.eq.s32.totalorder %s10, 0
      %p25 = por %p23, %p24
      %p26 = scmp.ne.s32.totalorder %s18, %s20
      %p27 = scmp.eq.s32.totalorder %s15, 1
      %p28 = por %p26, %p27
      %p29 = scmp.ne.s32.totalorder %s20, %s21
      %p30 = scmp.eq.s32.totalorder %s15, 0
      %p31 = por %p29, %p30
      %p32 = scmp.ne.s32.totalorder %s20, %s21
      %p33 = scmp.eq.s32.totalorder %s16, 1
      %p34 = por %p32, %p33
      %p36 = scmp.ne.s32.totalorder %s21, %s35
      %p37 = scmp.eq.s32.totalorder %s16, 0
      %p38 = por %p36, %p37
      %s39 = ssub.s32 %s10, %s17
      %p40 = scmp.eq.s32.totalorder %s39, 0
      %s42 = sadd.s32 %s41, 1
      %s43 = scalar_select %p40, %s41, %s42
      %p46 = pneg %p40
      %p47 = scmp.eq.s32.totalorder %s10, 1
      %p48 = por %p46, %p47
      %p49 = scmp.ne.s32.totalorder %s41, %s44
      %p50 = scmp.eq.s32.totalorder %s10, 0
      %p51 = por %p49, %p50
      %p52 = scmp.ne.s32.totalorder %s41, %s44
      %p53 = scmp.eq.s32.totalorder %s15, 1
      %p54 = por %p52, %p53
      %p55 = scmp.ne.s32.totalorder %s44, %s45
      %p56 = scmp.eq.s32.totalorder %s15, 0
      %p57 = por %p55, %p56
      %p58 = scmp.ne.s32.totalorder %s44, %s45
      %p59 = scmp.eq.s32.totalorder %s16, 1
      %p60 = por %p58, %p59
      %p62 = scmp.ne.s32.totalorder %s45, %s61
      %p63 = scmp.eq.s32.totalorder %s16, 0
      %p64 = por %p62, %p63
      %s66 = sadd.s32 %s65, 1
      %p69 = scmp.eq.s32.totalorder %s10, 1
      %p70 = scmp.ne.s32.totalorder %s65, %s67
      %p71 = scmp.eq.s32.totalorder %s10, 0
      %p72 = por %p70, %p71
      %p73 = scmp.ne.s32.totalorder %s65, %s67
      %p74 = scmp.eq.s32.totalorder %s15, 1
      %p75 = por %p73, %p74
      %p76 = scmp.ne.s32.totalorder %s67, %s68
      %p77 = scmp.eq.s32.totalorder %s15, 0
      %p78 = por %p76, %p77
      %p79 = scmp.ne.s32.totalorder %s67, %s68
      %p80 = scmp.eq.s32.totalorder %s16, 1
      %p81 = por %p79, %p80
      %p83 = scmp.ne.s32.totalorder %s68, %s82
      %p84 = scmp.eq.s32.totalorder %s16, 0
      %p85 = por %p83, %p84
      %s87 = sadd.s32 %s86, 1
      %p90 = scmp.eq.s32.totalorder %s10, 1
      %p91 = scmp.ne.s32.totalorder %s86, %s88
      %p92 = scmp.eq.s32.totalorder %s10, 0
      %p93 = por %p91, %p92
      %p94 = scmp.ne.s32.totalorder %s86, %s88
      %p95 = scmp.eq.s32.totalorder %s15, 1
      %p96 = por %p94, %p95
      %p97 = scmp.ne.s32.totalorder %s88, %s89
      %p98 = scmp.eq.s32.totalorder %s15, 0
      %p99 = por %p97, %p98
      %p100 = scmp.ne.s32.totalorder %s88, %s89
      %p101 = scmp.eq.s32.totalorder %s16, 1
      %p102 = por %p100, %p101
      %p104 = scmp.ne.s32.totalorder %s89, %s103
      %p105 = scmp.eq.s32.totalorder %s16, 0
      %p106 = por %p104, %p105
      %s107 = ssub.s32 %s10, %s17
      %p108 = scmp.eq.s32.totalorder %s107, 0
      %s110 = sadd.s32 %s109, 1
      %s111 = scalar_select %p108, %s109, %s110
      %p114 = pneg %p108
      %p115 = scmp.eq.s32.totalorder %s10, 1
      %p116 = por %p114, %p115
      %p117 = scmp.ne.s32.totalorder %s109, %s112
      %p118 = scmp.eq.s32.totalorder %s10, 0
      %p119 = por %p117, %p118
      %p120 = scmp.ne.s32.totalorder %s109, %s112
      %p121 = scmp.eq.s32.totalorder %s15, 1
      %p122 = por %p120, %p121
      %p123 = scmp.ne.s32.totalorder %s112, %s113
      %p124 = scmp.eq.s32.totalorder %s15, 0
      %p125 = por %p123, %p124
      %p126 = scmp.ne.s32.totalorder %s112, %s113
      %p127 = scmp.eq.s32.totalorder %s16, 1
      %p128 = por %p126, %p127
      %p130 = scmp.ne.s32.totalorder %s113, %s129
      %p131 = scmp.eq.s32.totalorder %s16, 0
      %p132 = por %p130, %p131
      %p133 = scmp.le.s32.totalorder 1, %s10
      %p134 = scmp.lt.s32.totalorder %s10, 3
      %p135 = pnand %p133, %p134
      %p136 = pneg %p135
      // Predicated region
      $region9: #{cvae_forward.19} parent=5 // pred_check
        _
      $region10: #{cvae_forward.19} parent=5 // pred_check_branch
        %138 = sbr.rel (%p135) target = $region12
      $region11: #{cvae_forward.19} parent=5 // pred_region
        %s139 = ssub.s32 %s10, 1
        // Predicated region
        $region13: #{cvae_forward.19} parent=11 // pred_check
          %p140 = pneg %p31
        $region14: #{cvae_forward.19} parent=11 // pred_check_branch
          %142 = sbr.rel (%p140) target = $region16
        $region15: #{cvae_forward.19} parent=11 // pred_region
          _
        $region16: #{cvae_forward.19} parent=11 // pred_fallthru
          _
        // Predicated region
        $region17: #{cvae_forward.19} parent=11 // pred_check
          %p143 = pneg %p78
        $region18: #{cvae_forward.19} parent=11 // pred_check_branch
          %145 = sbr.rel (%p143) target = $region20
        $region19: #{cvae_forward.19} parent=11 // pred_region
          _
        $region20: #{cvae_forward.19} parent=11 // pred_fallthru
          _
        // Predicated region
        $region21: #{cvae_forward.19} parent=11 // pred_check
          %p146 = pneg %p99
        $region22: #{cvae_forward.19} parent=11 // pred_check_branch
          %148 = sbr.rel (%p146) target = $region24
        $region23: #{cvae_forward.19} parent=11 // pred_region
          _
        $region24: #{cvae_forward.19} parent=11 // pred_fallthru
          _
      $region12: #{cvae_forward.19} parent=5 // pred_fallthru
        _
      %p149 = scmp.lt.s32.totalorder %s10, 2
      // Predicated region
      $region25: #{cvae_forward.19} parent=5 // pred_check
        %p150 = pneg %p149
      $region26: #{cvae_forward.19} parent=5 // pred_check_branch
        %152 = sbr.rel (%p150) target = $region28
      $region27: #{cvae_forward.19} parent=5 // pred_region
        // Predicated region
        $region29: #{cvae_forward.19} parent=27 // pred_check
          %p153 = pneg %p51
        $region30: #{cvae_forward.19} parent=27 // pred_check_branch
          %155 = sbr.rel (%p153) target = $region32
        $region31: #{cvae_forward.19} parent=27 // pred_region
          %s156 = sand.u32 %s41, 1
          %s157 = sand.u32 %s41, 1
          %s158 = smul.addr %s157, 72
          %s159 = scalar_lea.vmem [#allocation2], %s158
          %s160 = smul.u32 2, %s10
          %s161 = smul.addr %s160, 4
          %s162 = scalar_lea.vmem %s1, %s161
          // Predicated region
          $region33: #{cvae_forward.19} parent=31 // pred_check
            _
          $region34: #{cvae_forward.19} parent=31 // pred_check_branch
            %164 = sbr.rel (0) target = $region36
          $region35: #{cvae_forward.19} parent=31 // pred_region
            // Predicated region
            $region37: #{cvae_forward.19} parent=35 // pred_check
              _
            $region38: #{cvae_forward.19} parent=35 // pred_check_branch
              %166 = sbr.rel (0) target = $region40
            $region39: #{cvae_forward.19} parent=35 // pred_region
              // Predicated region
              $region52: #{cvae_forward.19} parent=39 // pred_check
                _
              $region53: #{cvae_forward.19} parent=39 // pred_check_branch
                %197 = sbr.rel (0) target = $region55
              $region54: #{cvae_forward.19} parent=39 // pred_region
                loop: start=0, step=1, limit=1
                $region56: #{cvae_forward.19} parent=54 // loop_pre_header
                  _
                $region57: #{cvae_forward.19} parent=54 // loop_header
                  %s199 = sphi 0, %s203
                  %p200 = scmp.ge.s32.totalorder %s199, 1
                  %s204 = sphi %s162, %s162
                  %s205 = sphi %s159, %s159
                $region58: #{cvae_forward.19} parent=54 // loop_header_branch
                  %202 = sbr.rel (%p200) target = $region62
                $region59: #{cvae_forward.19} parent=54 // loop_body
                  %v206 = vld [vmem:[%s204] sm:$0xff]
                  %207 = vst [vmem:[%s205] sm:$0xff] %v206
                  %v208 = vld [vmem:[%s204 + $0x10] sm:$0xff]
                  %209 = vst [vmem:[%s205 + $0x8] sm:$0xff] %v208
                  %v210 = vld [vmem:[%s204 + $0x20] sm:$0xff]
                  %211 = vst [vmem:[%s205 + $0x10] sm:$0xff] %v210
                  %v212 = vld [vmem:[%s204 + $0x30] sm:$0xff]
                  %213 = vst [vmem:[%s205 + $0x18] sm:$0xff] %v212
                  %v214 = vld [vmem:[%s204 + $0x40] sm:$0xff]
                  %215 = vst [vmem:[%s205 + $0x20] sm:$0xff] %v214
                  %v216 = vld [vmem:[%s204 + $0x50] sm:$0xff]
                  %217 = vst [vmem:[%s205 + $0x28] sm:$0xff] %v216
                  %v218 = vld [vmem:[%s204 + $0x60] sm:$0xff]
                  %219 = vst [vmem:[%s205 + $0x30] sm:$0xff] %v218
                  %v220 = vld [vmem:[%s204 + $0x70] sm:$0xff]
                  %221 = vst [vmem:[%s205 + $0x38] sm:$0xff] %v220
                  %v222 = vld [vmem:[%s204 + $0x80] sm:$0xff]
                  %223 = vst [vmem:[%s205 + $0x40] sm:$0xff] %v222
                $region60: #{cvae_forward.19} parent=54 // loop_footer
                  %s203 = sadd.s32 1, %s199
                $region61: #{cvae_forward.19} parent=54 // loop_footer_branch
                  %198 = sbr.rel target = $region57
                $region62: #{cvae_forward.19} parent=54 // loop_exit
                  _
              $region55: #{cvae_forward.19} parent=39 // pred_fallthru
                _
              // Predicated region
              $region63: #{cvae_forward.19} parent=39 // pred_check
                _
              $region64: #{cvae_forward.19} parent=39 // pred_check_branch
                %225 = sbr.rel target = $region66
              $region65: #{cvae_forward.19} parent=39 // pred_region
                _
              $region66: #{cvae_forward.19} parent=39 // pred_fallthru
                _
            $region40: #{cvae_forward.19} parent=35 // pred_fallthru
              _
            // Predicated region
            $region41: #{cvae_forward.19} parent=35 // pred_check
              _
            $region42: #{cvae_forward.19} parent=35 // pred_check_branch
              %168 = sbr.rel target = $region44
            $region43: #{cvae_forward.19} parent=35 // pred_region
              loop: start=0, step=1, limit=1
              $region45: #{cvae_forward.19} parent=43 // loop_pre_header
                _
              $region46: #{cvae_forward.19} parent=43 // loop_header
                %s171 = sphi 0, %s175
                %p172 = scmp.ge.s32.totalorder %s171, 1
                %s176 = sphi %s162, %s162
                %s177 = sphi %s159, %s159
              $region47: #{cvae_forward.19} parent=43 // loop_header_branch
                %174 = sbr.rel (%p172) target = $region51
              $region48: #{cvae_forward.19} parent=43 // loop_body
                %v178 = vld [vmem:[%s176] sm:$0xff]
                %179 = vst [vmem:[%s177] sm:$0xff] %v178
                %v180 = vld [vmem:[%s176 + $0x10] sm:$0xff]
                %181 = vst [vmem:[%s177 + $0x8] sm:$0xff] %v180
                %v182 = vld [vmem:[%s176 + $0x20] sm:$0xff]
                %183 = vst [vmem:[%s177 + $0x10] sm:$0xff] %v182
                %v184 = vld [vmem:[%s176 + $0x30] sm:$0xff]
                %185 = vst [vmem:[%s177 + $0x18] sm:$0xff] %v184
                %v186 = vld [vmem:[%s176 + $0x40] sm:$0xff]
                %187 = vst [vmem:[%s177 + $0x20] sm:$0xff] %v186
                %v188 = vld [vmem:[%s176 + $0x50] sm:$0xff]
                %189 = vst [vmem:[%s177 + $0x28] sm:$0xff] %v188
                %v190 = vld [vmem:[%s176 + $0x60] sm:$0xff]
                %191 = vst [vmem:[%s177 + $0x30] sm:$0xff] %v190
                %v192 = vld [vmem:[%s176 + $0x70] sm:$0xff]
                %193 = vst [vmem:[%s177 + $0x38] sm:$0xff] %v192
                %v194 = vld [vmem:[%s176 + $0x80] sm:$0xff]
                %195 = vst [vmem:[%s177 + $0x40] sm:$0xff] %v194
              $region49: #{cvae_forward.19} parent=43 // loop_footer
                %s175 = sadd.s32 1, %s171
              $region50: #{cvae_forward.19} parent=43 // loop_footer_branch
                %170 = sbr.rel target = $region46
              $region51: #{cvae_forward.19} parent=43 // loop_exit
                _
            $region44: #{cvae_forward.19} parent=35 // pred_fallthru
              _
          $region36: #{cvae_forward.19} parent=31 // pred_fallthru
            _
          %226 = vnop
        $region32: #{cvae_forward.19} parent=27 // pred_fallthru
          _
      $region28: #{cvae_forward.19} parent=5 // pred_fallthru
        _
      %p227 = scmp.le.s32.totalorder 1, %s10
      %p228 = scmp.lt.s32.totalorder %s10, 3
      %p229 = pnand %p227, %p228
      %p230 = pneg %p229
      // Predicated region
      $region67: #{cvae_forward.19} parent=5 // pred_check
        _
      $region68: #{cvae_forward.19} parent=5 // pred_check_branch
        %232 = sbr.rel (%p229) target = $region70
      $region69: #{cvae_forward.19} parent=5 // pred_region
        %s233 = ssub.s32 %s10, 1
        %s234 = sand.u32 %s44, 1
        %s235 = sand.u32 %s44, 1
        %s236 = smul.addr %s235, 72
        %s237 = scalar_lea.vmem [#allocation2], %s236
        // Predicated region
        $region71: #{cvae_forward.19} parent=69 // pred_check
          %p238 = pneg %p57
        $region72: #{cvae_forward.19} parent=69 // pred_check_branch
          %240 = sbr.rel (%p238) target = $region74
        $region73: #{cvae_forward.19} parent=69 // pred_region
          _
        $region74: #{cvae_forward.19} parent=69 // pred_fallthru
          _
        %p241 = pneg %p31
        %p242 = pneg %p28
        %s243 = sand.u32 %s44, 1
        %s244 = sand.u32 %s44, 1
        %s245 = smul.addr %s244, 72
        %s246 = scalar_lea.vmem [#allocation2], %s245
        %p247 = pneg %p57
        %p248 = pneg %p54
        %p249 = pneg %p78
        %p250 = pneg %p75
        %p251 = pneg %p99
        %p252 = pneg %p96
        %p253 = pneg %p125
        %p254 = pneg %p122
        %s255 = sand.u32 %s112, 1
        %s256 = sand.u32 %s112, 1
        %s257 = smul.addr %s256, 32
        %s258 = scalar_lea.vmem [#allocation3], %s257
        %s259 = smul.u32 2, %s15
        %s260 = smul.u32 2, %s15
        %v262 = vld [vmem:[%s0] sm:$0xf]
        %v263 = vld [vmem:[%s0 + $0x4] sm:$0x3]
        %v264 = vld [vmem:[%s237] sm:$0xff]
        %v265 = vld [vmem:[%s237 + $0x8] sm:$0xff]
        %v266 = vld [vmem:[%s237 + $0x10] sm:$0xff]
        %v267 = vld [vmem:[%s237 + $0x18] sm:$0xff]
        %v268 = vld [vmem:[%s237 + $0x20] sm:$0xff]
        %v269 = vld [vmem:[%s237 + $0x28] sm:$0xff]
        %v270 = vld [vmem:[%s237 + $0x30] sm:$0xff]
        %v271 = vld [vmem:[%s237 + $0x38] sm:$0xff]
        %v272 = vld [vmem:[%s237 + $0x40] sm:$0xff]
        %v275 = vunpack.c.l.b16 %v262
        %v276 = vunpack.c.l.b16 %v263
        %v277 = vpack.c.b16 %v276, %v275
        %v287 = vunpack.c.l.b16 %v264
        %v288 = vunpack.c.h.b16 %v264
        %v289 = vunpack.c.l.b16 %v265
        %v290 = vunpack.c.h.b16 %v265
        %v291 = vunpack.c.l.b16 %v266
        %v292 = vunpack.c.h.b16 %v266
        %v293 = vunpack.c.l.b16 %v267
        %v294 = vunpack.c.h.b16 %v267
        %v295 = vunpack.c.l.b16 %v268
        %v296 = vunpack.c.h.b16 %v268
        %v297 = vunpack.c.l.b16 %v269
        %v298 = vunpack.c.h.b16 %v269
        %v299 = vunpack.c.l.b16 %v270
        %v300 = vunpack.c.h.b16 %v270
        %v301 = vunpack.c.l.b16 %v271
        %v302 = vunpack.c.h.b16 %v271
        %v303 = vunpack.c.l.b16 %v272
        %v304 = vunpack.c.h.b16 %v272
        %v305 = vpack.c.b16 %v289, %v287
        %v306 = vpack.c.b16 %v290, %v288
        %v307 = vpack.c.b16 %v293, %v291
        %v308 = vpack.c.b16 %v294, %v292
        %v309 = vpack.c.b16 %v297, %v295
        %v310 = vpack.c.b16 %v298, %v296
        %v311 = vpack.c.b16 %v301, %v299
        %v312 = vpack.c.b16 %v302, %v300
        %v313 = vpack.c.b16 %v303, %v303
        %v314 = vpack.c.b16 %v304, %v304
        %vm323 = vcmask 588800
        %v325 = vsel %vm323, %v277, 0
        %vm327 = vcmask 1043456
        %v329 = vsel %vm327, %v313, 0
        %v332 = vsel %vm327, %v314, 0
        %334 = vmatprep.subr.bf16.mxu0 %v306
        %335 = vmatpush1.bf16.msra.mxu0 %v305
        %336 = vmatprep.subr.bf16.mxu0 %v308
        %337 = vmatpush1.bf16.msra.mxu0 %v307
        %338 = vmatprep.subr.bf16.mxu0 %v310
        %339 = vmatpush1.bf16.msra.mxu0 %v309
        %340 = vmatprep.subr.bf16.mxu0 %v312
        %341 = vmatpush1.bf16.msra.mxu0 %v311
        %342 = vmatprep.subr.bf16.mxu0 %v332
        %343 = vmatpush1.bf16.msra.mxu0 %v329
        %344 = vmatprep.subr.bf16.mxu0 0
        %345 = vmatpush1.bf16.msra.mxu0 0
        %346 = vmatprep.subr.bf16.mxu0 0
        %347 = vmatpush1.bf16.msra.mxu0 0
        %348 = vmatprep.subr.bf16.mxu0 0
        %349 = vmatpush1.bf16.msra.mxu0 0
        %350 = vmatprep.subr.bf16.mxu0 0
        %351 = vmatpush1.bf16.msra.mxu0 0
        %352 = vmatprep.subr.bf16.mxu0 0
        %353 = vmatpush1.bf16.msra.mxu0 0
        %354 = vmatprep.subr.bf16.mxu0 0
        %355 = vmatpush1.bf16.msra.mxu0 0
        %356 = vmatprep.subr.bf16.mxu0 0
        %357 = vmatpush1.bf16.msra.mxu0 0
        %358 = vmatprep.subr.bf16.mxu0 0
        %359 = vmatpush1.bf16.msra.mxu0 0
        %360 = vmatprep.subr.bf16.mxu0 0
        %361 = vmatpush1.bf16.msra.mxu0 0
        %362 = vmatprep.subr.bf16.mxu0 0
        %363 = vmatpush1.bf16.msra.mxu0 0
        %364 = vmatprep.subr.bf16.mxu0 0
        %365 = vmatpush1.bf16.msra.mxu0 0
        %366 = vmatprep.mubr.bf16.mxu0 0
        %367 = vmatmul.mubr.bf16.gmra.mrb[0].mxu0 %v325
        %v368 = vpop.f32.mrb[0].mxu0
        %v369 = vadd.f32 0.0, %v368
        %v370 = vpop.f32.mrb[0].mxu0
        %v371 = vadd.f32 0.0, %v370
        %v372 = vpop.f32.mrb[0].mxu0
        %v373 = vadd.f32 0.0, %v372
        %v374 = vpop.f32.mrb[0].mxu0
        %v375 = vadd.f32 0.0, %v374
        %376 = vdwg.mxu0
        %v377 = vld [vmem:[%s2] sm:$0xff]
        %v378 = vld [vmem:[%s2 + $0x8] sm:$0xf]
        %380 = vset.pattern.permute.xlu0 0
        %381 = vperm.xlu0 %380, %v377
        %v382 = vpop.permute.xlu0 %381
        %385 = vset.pattern.permute.xlu0 0
        %386 = vperm.xlu0 %385, %v378
        %v387 = vpop.permute.xlu0 %386
        %v389 = vmul.f32 %v369, %v382
        %v390 = vmul.f32 %v371, %v382
        %v391 = vmul.f32 %v373, %v387
        %v392 = vmul.f32 %v375, %v387
        %v393 = vld [vmem:[%s3] sm:$0xff]
        %v394 = vld [vmem:[%s3 + $0x8] sm:$0xf]
        %396 = vset.pattern.permute.xlu0 0
        %397 = vperm.xlu0 %396, %v393
        %v398 = vpop.permute.xlu0 %397
        %401 = vset.pattern.permute.xlu0 0
        %402 = vperm.xlu0 %401, %v394
        %v403 = vpop.permute.xlu0 %402
        %v405 = vadd.f32 %v389, %v398
        %v406 = vadd.f32 %v390, %v398
        %v407 = vadd.f32 %v391, %v403
        %v408 = vadd.f32 %v392, %v403
        %v409 = vtanh.pop %v405
        %v410 = vtanh.pop %v406
        %v411 = vtanh.pop %v407
        %v412 = vtanh.pop %v408
        %413 = vst [vmem:[%s258] sm:$0xff] %v409
        %414 = vst [vmem:[%s258 + $0x8] sm:$0xff] %v410
        %415 = vst [vmem:[%s258 + $0x10] sm:$0xf] %v411
        %416 = vst [vmem:[%s258 + $0x18] sm:$0xf] %v412
        %s417 = sand.u32 %s112, 1
        %s418 = sand.u32 %s112, 1
        %s419 = smul.addr %s418, 32
        %s420 = scalar_lea.vmem [#allocation3], %s419
        // Predicated region
        $region75: #{cvae_forward.19} parent=69 // pred_check
          %p421 = pneg %p122
        $region76: #{cvae_forward.19} parent=69 // pred_check_branch
          %423 = sbr.rel (%p421) target = $region78
        $region77: #{cvae_forward.19} parent=69 // pred_region
          %s424 = smul.u32 2, %s15
          %s425 = smul.addr %s424, 8
          %s426 = scalar_lea.vmem %s4, %s425
          // Predicated region
          $region79: #{cvae_forward.19} parent=77 // pred_check
            _
          $region80: #{cvae_forward.19} parent=77 // pred_check_branch
            %428 = sbr.rel (0) target = $region82
          $region81: #{cvae_forward.19} parent=77 // pred_region
            // Predicated region
            $region83: #{cvae_forward.19} parent=81 // pred_check
              _
            $region84: #{cvae_forward.19} parent=81 // pred_check_branch
              %430 = sbr.rel (0) target = $region86
            $region85: #{cvae_forward.19} parent=81 // pred_region
              loop: start=0, step=1, limit=1
              $region87: #{cvae_forward.19} parent=85 // loop_pre_header
                _
              $region88: #{cvae_forward.19} parent=85 // loop_header
                %s432 = sphi 0, %s436
                %p433 = scmp.ge.s32.totalorder %s432, 1
                %s437 = sphi %s420, %s420
                %s438 = sphi %s426, %s426
              $region89: #{cvae_forward.19} parent=85 // loop_header_branch
                %435 = sbr.rel (%p433) target = $region93
              $region90: #{cvae_forward.19} parent=85 // loop_body
                %v439 = vld [vmem:[%s437] sm:$0xff]
                %440 = vst [vmem:[%s438] sm:$0xff] %v439
                %v441 = vld [vmem:[%s437 + $0x8] sm:$0xff]
                %442 = vst [vmem:[%s438 + $0x8] sm:$0xff] %v441
                %v443 = vld [vmem:[%s437 + $0x10] sm:$0xff]
                %444 = vst [vmem:[%s438 + $0x20] sm:$0xff] %v443
                %v445 = vld [vmem:[%s437 + $0x18] sm:$0xff]
                %446 = vst [vmem:[%s438 + $0x28] sm:$0xff] %v445
              $region91: #{cvae_forward.19} parent=85 // loop_footer
                %s436 = sadd.s32 1, %s432
              $region92: #{cvae_forward.19} parent=85 // loop_footer_branch
                %431 = sbr.rel target = $region88
              $region93: #{cvae_forward.19} parent=85 // loop_exit
                _
            $region86: #{cvae_forward.19} parent=81 // pred_fallthru
              _
            // Predicated region
            $region94: #{cvae_forward.19} parent=81 // pred_check
              _
            $region95: #{cvae_forward.19} parent=81 // pred_check_branch
              %448 = sbr.rel target = $region97
            $region96: #{cvae_forward.19} parent=81 // pred_region
              _
            $region97: #{cvae_forward.19} parent=81 // pred_fallthru
              _
          $region82: #{cvae_forward.19} parent=77 // pred_fallthru
            _
          %449 = vnop
        $region78: #{cvae_forward.19} parent=69 // pred_fallthru
          _
      $region70: #{cvae_forward.19} parent=5 // pred_fallthru
        _
      %p450 = scmp.le.s32.totalorder 2, %s10
      // Predicated region
      $region98: #{cvae_forward.19} parent=5 // pred_check
        %p451 = pneg %p450
      $region99: #{cvae_forward.19} parent=5 // pred_check_branch
        %453 = sbr.rel (%p451) target = $region101
      $region100: #{cvae_forward.19} parent=5 // pred_region
        %s454 = ssub.s32 %s10, 2
        // Predicated region
        $region102: #{cvae_forward.19} parent=100 // pred_check
          %p455 = pneg %p128
        $region103: #{cvae_forward.19} parent=100 // pred_check_branch
          %457 = sbr.rel (%p455) target = $region105
        $region104: #{cvae_forward.19} parent=100 // pred_region
          %s458 = sand.u32 %s113, 1
          %s459 = sand.u32 %s113, 1
          %s460 = smul.addr %s459, 32
          %s461 = scalar_lea.vmem [#allocation3], %s460
        $region105: #{cvae_forward.19} parent=100 // pred_fallthru
          _
      $region101: #{cvae_forward.19} parent=5 // pred_fallthru
        _
    $region6: #{cvae_forward.19} parent=1 // loop_footer
      %s14 = sadd.s32 1, %s10
    $region7: #{cvae_forward.19} parent=1 // loop_footer_branch
      %9 = sbr.rel target = $region3
    $region8: #{cvae_forward.19} parent=1 // loop_exit
      _

</llo_original>
